<compile_context>
chip_gen: v6e
topology: v6e:2x2x1
jax: 0.10.0
libtpu: 0.0.40
codegen_flags: <defaults>
</compile_context>

<pallas_src>
import functools

import jax
import jax.numpy as jnp
from jax.experimental import pallas as pl
from jax.experimental.pallas import tpu as pltpu


# --------------------------------------------------------------------------- #
# Kernel
# --------------------------------------------------------------------------- #
def _mlp_kernel(x_ref, w13_ref, w2_ref, o_ref, acc_ref):
    # x_ref:   (tm, dim)       bf16 batch tile         (constant along k)
    # w13_ref: (dim, 2*tn)     bf16 [w1^T blk | w3^T blk] for hidden block k
    # w2_ref:  (tn, dim)       bf16 w2^T block for hidden block k
    # o_ref:   (tm, dim)       output tile (written at last k)
    # acc_ref: (tm, dim) f32   down-projection accumulator
    k = pl.program_id(1)

    @pl.when(k == 0)
    def _():
        acc_ref[...] = jnp.zeros_like(acc_ref)

    tn = w2_ref.shape[0]
    x = x_ref[...]

    # Fused gate+up projection on the MXU, f32 accumulation.
    h = jnp.dot(x, w13_ref[...], preferred_element_type=jnp.float32)  # (tm, 2*tn)
    h1 = h[:, :tn]   # tn is a multiple of 128 -> lane-tile aligned slice
    h3 = h[:, tn:]

    # SiLU(h1) * h3 entirely in f32 (EUP sigmoid + VPU mul), single downcast.
    gated = (h1 * jax.nn.sigmoid(h1)) * h3

    # Down projection for this hidden block, accumulate in f32.
    acc_ref[...] += jnp.dot(gated.astype(w2_ref.dtype), w2_ref[...],
                            preferred_element_type=jnp.float32)

    @pl.when(k == pl.num_programs(1) - 1)
    def _():
        o_ref[...] = acc_ref[...].astype(o_ref.dtype)


# --------------------------------------------------------------------------- #
# Chip-aware configuration helpers (all run at trace time, pure Python)
# --------------------------------------------------------------------------- #
def _device_kind() -> str:
    try:
        return jax.devices()[0].device_kind.lower()
    except Exception:  # noqa: BLE001 - be permissive on exotic runtimes
        return ""


def _chip_defaults():
    kind = _device_kind()
    if "v7" in kind:
        # v7x: 64 MiB VMEM / TC, 2 TCs/chip -> cap tm, ensure >=2 parallel tiles.
        return dict(tm_max=384, vmem_limit=48 * 1024 * 1024, min_parallel_tiles=2)
    if "v6" in kind:
        # v6e: compute-bound only at tm ~ 650+; 128 MiB physical VMEM.
        return dict(tm_max=1024, vmem_limit=100 * 1024 * 1024, min_parallel_tiles=1)
    # v5e (and unknown): balance point ~ tm 240-384; raise above 16 MiB scoped default.
    return dict(tm_max=384, vmem_limit=64 * 1024 * 1024, min_parallel_tiles=1)


def _round_up(x, m):
    return -(-x // m) * m


def _pick_tm(B, tm_max, min_parallel_tiles):
    """Adaptive batch tile: minimal padding, multiple of 8, respects tm_max,
    and (when the batch is big enough) at least `min_parallel_tiles` tiles so the
    'parallel' grid axis shards across multiple TensorCores."""
    n_tiles = max(pl.cdiv(B, tm_max), min(min_parallel_tiles, pl.cdiv(B, 8)))
    tm = _round_up(pl.cdiv(B, n_tiles), 8)
    return tm


def _vmem_estimate(tm, tn, dim, out_itemsize, w_itemsize):
    acc = tm * dim * 4                       # f32 accumulator (single-buffered scratch)
    h = tm * 2 * tn * 4                      # f32 gate/up intermediate
    x = 2 * tm * dim * w_itemsize            # double-buffered input tile
    out = 2 * tm * dim * out_itemsize        # double-buffered output tile
    w13 = 2 * dim * 2 * tn * w_itemsize      # double-buffered fused gate|up block
    w2 = 2 * tn * dim * w_itemsize           # double-buffered down-proj block
    return acc + h + x + out + w13 + w2


# --------------------------------------------------------------------------- #
# Weight prep (one-time, weight-load time) + forward wrapper
# --------------------------------------------------------------------------- #
def prepare_weights(w1, w2, w3, *, tn=None, compute_dtype=jnp.bfloat16):
    """One-time weight prep (do at weight-load time, NOT per call).

    w1, w3: (hidden, dim)  w2: (dim, hidden)   -- PyTorch nn.Linear layout.
    Returns:
      w13t: (nk, dim, 2*tn) bf16 -- pre-blocked per hidden tile, each block is
            [w1^T cols k*tn:(k+1)*tn | w3^T cols k*tn:(k+1)*tn]  (contiguous DMA).
      w2t:  (hidden, dim)   bf16 -- w2^T.
    The hidden tile tn is recoverable from w13t.shape[-1] // 2, so the forward
    pass cannot silently de-interleave with a mismatched tn.
    """
    hidden, dim = w1.shape
    if tn is None:
        tn = min(512, hidden)
    assert hidden % tn == 0, "hidden must be divisible by the hidden tile tn"
    assert tn == hidden or tn % 128 == 0, "tn must be a multiple of 128 (lane tile)"
    nk = hidden // tn

    w1t = w1.T.astype(compute_dtype)  # (dim, hidden)
    w3t = w3.T.astype(compute_dtype)  # (dim, hidden)
    w13t = jnp.concatenate(
        [w1t.reshape(dim, nk, tn), w3t.reshape(dim, nk, tn)], axis=2
    )                                  # (dim, nk, 2*tn)
    w13t = jnp.transpose(w13t, (1, 0, 2))  # (nk, dim, 2*tn): contiguous per block
    w2t = w2.T.astype(compute_dtype)   # (hidden, dim)
    return w13t, w2t


@functools.partial(jax.jit, static_argnames=("tm",))
def mlp_forward(x, w13t, w2t, *, tm=None):
    """x: (B, dim). w13t/w2t from prepare_weights. Returns (B, dim) in x.dtype."""
    B, dim = x.shape
    nk, dim2, two_tn = w13t.shape
    tn = two_tn // 2
    hidden = nk * tn
    assert dim2 == dim, "w13t dim mismatch"
    assert two_tn == 2 * tn
    assert w2t.shape == (hidden, dim), "w2t shape mismatch"

    cfg = _chip_defaults()
    out_dtype = x.dtype
    out_isz = jnp.dtype(out_dtype).itemsize
    w_isz = jnp.dtype(w13t.dtype).itemsize

    # --- batch tile selection --------------------------------------------- #
    if tm is None:
        tm = _pick_tm(B, cfg["tm_max"], cfg["min_parallel_tiles"])
    else:
        tm = min(tm, B)
        if B > tm:
            assert tm % 8 == 0, "tm must be a multiple of 8 when tiling the batch"

    # Shrink tm if the double-buffered working set would overflow scoped VMEM.
    while tm > 8 and _vmem_estimate(tm, tn, dim, out_isz, w_isz) > 0.85 * cfg["vmem_limit"]:
        tm = max(8, _round_up(tm // 2, 8))

    nm = pl.cdiv(B, tm)
    Bp = nm * tm
    pad = Bp - B
    if pad:
        x = jnp.pad(x, ((0, pad), (0, 0)))

    xq = x.astype(w13t.dtype)  # bf16 operands for the MXU

    # --- cost estimate (weights are re-streamed once per batch tile) ------ #
    flops = 6 * Bp * dim * hidden                    # 2*B*dim*2H + 2*B*H*dim
    bytes_accessed = (Bp * dim * (w_isz + out_isz)
                      + nm * (w13t.size + w2t.size) * w_isz)

    out = pl.pallas_call(
        _mlp_kernel,
        out_shape=jax.ShapeDtypeStruct((Bp, dim), out_dtype),
        grid_spec=pltpu.PrefetchScalarGridSpec(
            num_scalar_prefetch=0,
            grid=(nm, nk),                                        # reduction axis last
            in_specs=[
                pl.BlockSpec((tm, dim), lambda i, k: (i, 0)),     # x tile (const over k)
                pl.BlockSpec((None, dim, 2 * tn),                 # contiguous w13 block,
                             lambda i, k: (k, 0, 0)),             # leading dim squeezed
                pl.BlockSpec((tn, dim), lambda i, k: (k, 0)),     # w2^T block
            ],
            out_specs=pl.BlockSpec((tm, dim), lambda i, k: (i, 0)),
            scratch_shapes=[pltpu.VMEM((tm, dim), jnp.float32)],
        ),
        compiler_params=pltpu.CompilerParams(
            dimension_semantics=("parallel", "arbitrary"),
            vmem_limit_bytes=cfg["vmem_limit"],
        ),
        cost_estimate=pl.CostEstimate(
            flops=flops,
            transcendentals=Bp * hidden,
            bytes_accessed=bytes_accessed,
        ),
    )(xq, w13t, w2t)

    return out[:B] if pad else out


def mlp_reference(x, w1, w2, w3):
    h1 = x @ w1.T
    h3 = x @ w3.T
    return (jax.nn.silu(h1) * h3) @ w2.T


# --------------------------------------------------------------------------- #
# Self-test
# --------------------------------------------------------------------------- #
if __name__ == "__main__":
    # Small shapes consistent with the module (batch, dim) x SwiGLU hidden.
    B, DIM, HIDDEN = 256, 256, 512
    TN = 256  # -> nk = 2 hidden blocks: exercises the accumulation path

    key = jax.random.PRNGKey(0)
    kx, k1, k2, k3 = jax.random.split(key, 4)

    x = jax.random.normal(kx, (B, DIM), dtype=jnp.float32)
    # deterministic "Linear(bias=False)" weights, PyTorch (out, in) layout
    w1 = jax.random.normal(k1, (HIDDEN, DIM), dtype=jnp.float32) * (1.0 / DIM ** 0.5)
    w2 = jax.random.normal(k2, (DIM, HIDDEN), dtype=jnp.float32) * (1.0 / HIDDEN ** 0.5)
    w3 = jax.random.normal(k3, (HIDDEN, DIM), dtype=jnp.float32) * (1.0 / DIM ** 0.5)

    # One-time weight prep (transpose + gate/up interleave + bf16 cast + pre-block).
    w13t, w2t = prepare_weights(w1, w2, w3, tn=TN, compute_dtype=jnp.bfloat16)

    ref = mlp_reference(x, w1, w2, w3)

    # 1) chip-adaptive tile selection (single or multi batch-tile depending on chip)
    out_auto = jax.block_until_ready(mlp_forward(x, w13t, w2t))
    # 2) explicit small tile: grid (2, 2) exercises the megacore-parallel batch axis
    out_tiled = jax.block_until_ready(mlp_forward(x, w13t, w2t, tm=128))

    assert out_auto.shape == (B, DIM) and out_tiled.shape == (B, DIM)
    # bf16 matmul operands (f32 accumulation) => loosened tolerance vs f32 reference.
    for out in (out_auto, out_tiled):
        max_err = jnp.max(jnp.abs(out - ref))
        assert jnp.allclose(out, ref, atol=6e-2, rtol=6e-2), f"max abs err {max_err}"

    print("KERNEL_OK")
</pallas_src>

<mosaic_0001>
module attributes {stable_mosaic.version = 11 : i64} {
  func.func @_mlp_kernel(%arg0: i32, %arg1: i32, %arg2: memref<256x256xbf16, #tpu.memory_space<vmem>>, %arg3: memref<1x256x512xbf16, #tpu.memory_space<vmem>>, %arg4: memref<256x256xbf16, #tpu.memory_space<vmem>>, %arg5: memref<256x256xf32, #tpu.memory_space<vmem>>, %arg6: memref<256x256xf32, #tpu.memory_space<vmem>>) attributes {dimension_semantics = [#tpu.dimension_semantics<parallel>, #tpu.dimension_semantics<arbitrary>], iteration_bounds = array<i64: 1, 2>, scalar_prefetch = 0 : i64, scratch_operands = 1 : i64, tpu.core_type = #tpu.core_type<tc>, window_params = [{transform_indices = @transform_0, window_bounds = array<i64: 256, 256>}, {transform_indices = @transform_1, window_bounds = array<i64: 1, 256, 512>}, {transform_indices = @transform_2, window_bounds = array<i64: 256, 256>}, {transform_indices = @transform_3, window_bounds = array<i64: 256, 256>}]} {
    %c0_i32 = arith.constant 0 : i32
    %0 = arith.cmpi eq, %arg1, %c0_i32 : i32
    %1 = arith.extui %0 : i1 to i32
    %c0_i32_0 = arith.constant 0 : i32
    %2 = arith.cmpi ne, %1, %c0_i32_0 : i32
    scf.if %2 {
      %cst_14 = arith.constant 0.000000e+00 : f32
      %25 = vector.broadcast %cst_14 : f32 to vector<256x256xf32>
      %c0_15 = arith.constant 0 : index
      %c0_16 = arith.constant 0 : index
      %26 = vector.load %arg6[%c0_15, %c0_16] : memref<256x256xf32, #tpu.memory_space<vmem>>, vector<256x256xf32>
      tpu.vector_store %arg6[%c0_15, %c0_16], %25 {strides = array<i32>} : memref<256x256xf32, #tpu.memory_space<vmem>>, vector<256x256xf32>,
    } else {
    }
    %c0 = arith.constant 0 : index
    %c0_1 = arith.constant 0 : index
    %3 = vector.load %arg2[%c0, %c0_1] : memref<256x256xbf16, #tpu.memory_space<vmem>>, vector<256x256xbf16>
    %c0_2 = arith.constant 0 : index
    %c0_3 = arith.constant 0 : index
    %c0_4 = arith.constant 0 : index
    %4 = vector.load %arg3[%c0_2, %c0_3, %c0_4] : memref<1x256x512xbf16, #tpu.memory_space<vmem>>, vector<1x256x512xbf16>
    %5 = vector.shape_cast %4 : vector<1x256x512xbf16> to vector<256x512xbf16>
    %cst = arith.constant dense<0.000000e+00> : vector<256x512xf32>
    %6 = tpu.matmul %3, %5, %cst {dimension_numbers = #tpu.dot_dimension_numbers<[1], [0], [0], [1], [0, 0, 1, 1], [], []>} : vector<256x256xbf16>, vector<256x512xbf16>, vector<256x512xf32> -> vector<256x512xf32>
    %7 = vector.extract_strided_slice %6 {offsets = [0, 0], sizes = [256, 256], strides = [1, 1]} : vector<256x512xf32> to vector<256x256xf32>
    %8 = vector.extract_strided_slice %6 {offsets = [0, 256], sizes = [256, 256], strides = [1, 1]} : vector<256x512xf32> to vector<256x256xf32>
    %9 = arith.negf %7 : vector<256x256xf32>
    %10 = math.exp %9 : vector<256x256xf32>
    %cst_5 = arith.constant 1.000000e+00 : f32
    %11 = vector.broadcast %cst_5 : f32 to vector<256x256xf32>
    %12 = arith.addf %11, %10 : vector<256x256xf32>
    %13 = arith.divf %11, %12 : vector<256x256xf32>
    %14 = arith.mulf %7, %13 : vector<256x256xf32>
    %15 = arith.mulf %14, %8 : vector<256x256xf32>
    %c0_6 = arith.constant 0 : index
    %c0_7 = arith.constant 0 : index
    %16 = vector.load %arg6[%c0_6, %c0_7] : memref<256x256xf32, #tpu.memory_space<vmem>>, vector<256x256xf32>
    %17 = arith.truncf %15 : vector<256x256xf32> to vector<256x256xbf16>
    %c0_8 = arith.constant 0 : index
    %c0_9 = arith.constant 0 : index
    %18 = vector.load %arg4[%c0_8, %c0_9] : memref<256x256xbf16, #tpu.memory_space<vmem>>, vector<256x256xbf16>
    %cst_10 = arith.constant dense<0.000000e+00> : vector<256x256xf32>
    %19 = tpu.matmul %17, %18, %cst_10 {dimension_numbers = #tpu.dot_dimension_numbers<[1], [0], [0], [1], [0, 0, 1, 1], [], []>} : vector<256x256xbf16>, vector<256x256xbf16>, vector<256x256xf32> -> vector<256x256xf32>
    %20 = arith.addf %16, %19 : vector<256x256xf32>
    %c0_11 = arith.constant 0 : index
    %c0_12 = arith.constant 0 : index
    %21 = vector.load %arg6[%c0_11, %c0_12] : memref<256x256xf32, #tpu.memory_space<vmem>>, vector<256x256xf32>
    tpu.vector_store %arg6[%c0_11, %c0_12], %20 {strides = array<i32>} : memref<256x256xf32, #tpu.memory_space<vmem>>, vector<256x256xf32>,
    %c1_i32 = arith.constant 1 : i32
    %22 = arith.cmpi eq, %arg1, %c1_i32 : i32
    %23 = arith.extui %22 : i1 to i32
    %c0_i32_13 = arith.constant 0 : i32
    %24 = arith.cmpi ne, %23, %c0_i32_13 : i32
    scf.if %24 {
      %c0_14 = arith.constant 0 : index
      %c0_15 = arith.constant 0 : index
      %25 = vector.load %arg6[%c0_14, %c0_15] : memref<256x256xf32, #tpu.memory_space<vmem>>, vector<256x256xf32>
      %c0_16 = arith.constant 0 : index
      %c0_17 = arith.constant 0 : index
      %26 = vector.load %arg5[%c0_16, %c0_17] : memref<256x256xf32, #tpu.memory_space<vmem>>, vector<256x256xf32>
      tpu.vector_store %arg5[%c0_16, %c0_17], %25 {strides = array<i32>} : memref<256x256xf32, #tpu.memory_space<vmem>>, vector<256x256xf32>,
    } else {
    }
    return
  }
  func.func @transform_0(%arg0: i32, %arg1: i32) -> (i32, i32) {
    %c0_i32 = arith.constant 0 : i32
    %c0_i32_0 = arith.constant 0 : i32
    return %arg0, %c0_i32 : i32, i32
  }
  func.func @transform_1(%arg0: i32, %arg1: i32) -> (i32, i32, i32) {
    %c0_i32 = arith.constant 0 : i32
    %c0_i32_0 = arith.constant 0 : i32
    %c0_i32_1 = arith.constant 0 : i32
    return %arg1, %c0_i32, %c0_i32_0 : i32, i32, i32
  }
  func.func @transform_2(%arg0: i32, %arg1: i32) -> (i32, i32) {
    %c0_i32 = arith.constant 0 : i32
    %c0_i32_0 = arith.constant 0 : i32
    return %arg1, %c0_i32 : i32, i32
  }
  func.func @transform_3(%arg0: i32, %arg1: i32) -> (i32, i32) {
    %c0_i32 = arith.constant 0 : i32
    %c0_i32_0 = arith.constant 0 : i32
    return %arg0, %c0_i32 : i32, i32
  }
}

</mosaic_0001>

<llo_original>
// kernel: mlp_forward.1
$region0: #{mlp_forward.1}
  #allocation0 [shape = 'u32[]', space=smem, size = 0x4, offset = 0x4, fixed_abs, tag = 'smem constant byte address 0x4 - core index']
  #allocation1 [shape = 'u32[144,128]{1,0:T(1,128)}', space=vmem, size = 0x12000, scoped, tag = 'internal scratch']
  #allocation2 [shape = 'f32[256,256]{1,0:T(8,128)}', space=vmem, size = 0x40000, scoped, tag = 'scratch operand']
  %s0 = inlined_call_operand.vmem [shape: bf16[256,256], index: 0, kind: input, shape index: {}]
  %s1 = inlined_call_operand.hbm [shape: bf16[2,256,512], index: 1, kind: input, shape index: {}]
  %s2 = inlined_call_operand.vmem [shape: bf16[512,256], index: 2, kind: input, shape index: {}]
  %s3 = inlined_call_operand.hbm [shape: f32[256,256], index: 3, kind: output, shape index: {}]
  %s4 = sld [smem:[#allocation0]]
  $region57: #{mlp_forward.1} parent=0
    _
  %s6 = ssub.s32 1, %s4
  %s7 = scalar_select 0, %s6, %s4
  $region1: #{mlp_forward.1} parent=0
    #allocation3 [shape = 'u8[524288]{0}', space=vmem, size = 0x80000, scoped, tag = 'input window, operand 1']
    #allocation4 [shape = 's32[2]{0}', space=sflag, size = 0x8, scoped, tag = 'scoped memory for mlp_forward.1']
    #allocation5 [shape = 's32[2]{0}', space=sflag, size = 0x8, scoped, tag = 'scoped memory for mlp_forward.1']
    #allocation6 [shape = 'u8[262144]{0}', space=vmem, size = 0x40000, scoped, tag = 'output window, operand 0, single buffered']
    %8 = vsyncpa [#allocation4], 0
    %s9 = scalar_lea.sflag [#allocation4], 1
    %10 = vsyncpa %s9, 0
    %11 = vsyncpa [#allocation5], 0
    loop: start=0, step=1, limit=4
    $region2: #{mlp_forward.1} parent=1 // loop_pre_header
      _
    $region3: #{mlp_forward.1} parent=1 // loop_header
      %s13 = sphi 0, %s17
      %p14 = scmp.ge.s32.totalorder %s13, 4
      %s20 = sphi 0, %s32
      %s21 = sphi 0, %s28
      %s22 = sphi 0, %s20
      %s23 = sphi 0, %s21
      %s24 = sphi 0, %s22
      %s25 = sphi 0, %s23
      %s35 = sphi 0, %s37
      %s38 = sphi 0, %s35
      %s39 = sphi 0, %s38
      %s55 = sphi 0, %s39
      %s61 = sphi 0, %s63
      %s64 = sphi 0, %s61
      %s65 = sphi 0, %s64
      %s81 = sphi 0, %s65
      %s87 = sphi 0, %s89
      %s90 = sphi 0, %s87
      %s91 = sphi 0, %s90
      %s107 = sphi 0, %s91
      %s113 = sphi 0, %s115
      %s116 = sphi 0, %s113
      %s117 = sphi 0, %s116
      %s133 = sphi 0, %s117
    $region4: #{mlp_forward.1} parent=1 // loop_header_branch
      %16 = sbr.rel (%p14) target = $region8
    $region5: #{mlp_forward.1} parent=1 // loop_body
      %s18 = ssub.s32 %s13, 1
      %s19 = ssub.s32 %s13, 2
      %s26 = sadd.s32 1, %s21
      %p27 = scmp.ge.s32.totalorder %s26, 2
      %s28 = scalar_select %p27, 0, %s26
      %s29 = sadd.s32 1, %s20
      %s30 = scalar_select %p27, %s29, %s20
      %p31 = scmp.ge.s32.totalorder %s30, 1
      %s32 = scalar_select %p31, 0, %s30
      %s33 = ssub.s32 %s20, %s32
      %p34 = scmp.eq.s32.totalorder %s33, 0
      %s36 = sadd.s32 %s35, 1
      %s37 = scalar_select %p34, %s35, %s36
      %p40 = pneg %p34
      %p41 = scmp.eq.s32.totalorder %s13, 1
      %p42 = por %p40, %p41
      %p43 = scmp.ne.s32.totalorder %s35, %s38
      %p44 = scmp.eq.s32.totalorder %s13, 0
      %p45 = por %p43, %p44
      %p46 = scmp.ne.s32.totalorder %s35, %s38
      %p47 = scmp.eq.s32.totalorder %s18, 1
      %p48 = por %p46, %p47
      %p49 = scmp.ne.s32.totalorder %s38, %s39
      %p50 = scmp.eq.s32.totalorder %s18, 0
      %p51 = por %p49, %p50
      %p52 = scmp.ne.s32.totalorder %s38, %s39
      %p53 = scmp.eq.s32.totalorder %s19, 1
      %p54 = por %p52, %p53
      %p56 = scmp.ne.s32.totalorder %s39, %s55
      %p57 = scmp.eq.s32.totalorder %s19, 0
      %p58 = por %p56, %p57
      %s59 = ssub.s32 %s21, %s28
      %p60 = scmp.eq.s32.totalorder %s59, 0
      %s62 = sadd.s32 %s61, 1
      %s63 = scalar_select %p60, %s61, %s62
      %p66 = pneg %p60
      %p67 = scmp.eq.s32.totalorder %s13, 1
      %p68 = por %p66, %p67
      %p69 = scmp.ne.s32.totalorder %s61, %s64
      %p70 = scmp.eq.s32.totalorder %s13, 0
      %p71 = por %p69, %p70
      %p72 = scmp.ne.s32.totalorder %s61, %s64
      %p73 = scmp.eq.s32.totalorder %s18, 1
      %p74 = por %p72, %p73
      %p75 = scmp.ne.s32.totalorder %s64, %s65
      %p76 = scmp.eq.s32.totalorder %s18, 0
      %p77 = por %p75, %p76
      %p78 = scmp.ne.s32.totalorder %s64, %s65
      %p79 = scmp.eq.s32.totalorder %s19, 1
      %p80 = por %p78, %p79
      %p82 = scmp.ne.s32.totalorder %s65, %s81
      %p83 = scmp.eq.s32.totalorder %s19, 0
      %p84 = por %p82, %p83
      %s85 = ssub.s32 %s21, %s28
      %p86 = scmp.eq.s32.totalorder %s85, 0
      %s88 = sadd.s32 %s87, 1
      %s89 = scalar_select %p86, %s87, %s88
      %p92 = pneg %p86
      %p93 = scmp.eq.s32.totalorder %s13, 1
      %p94 = por %p92, %p93
      %p95 = scmp.ne.s32.totalorder %s87, %s90
      %p96 = scmp.eq.s32.totalorder %s13, 0
      %p97 = por %p95, %p96
      %p98 = scmp.ne.s32.totalorder %s87, %s90
      %p99 = scmp.eq.s32.totalorder %s18, 1
      %p100 = por %p98, %p99
      %p101 = scmp.ne.s32.totalorder %s90, %s91
      %p102 = scmp.eq.s32.totalorder %s18, 0
      %p103 = por %p101, %p102
      %p104 = scmp.ne.s32.totalorder %s90, %s91
      %p105 = scmp.eq.s32.totalorder %s19, 1
      %p106 = por %p104, %p105
      %p108 = scmp.ne.s32.totalorder %s91, %s107
      %p109 = scmp.eq.s32.totalorder %s19, 0
      %p110 = por %p108, %p109
      %s111 = ssub.s32 %s20, %s32
      %p112 = scmp.eq.s32.totalorder %s111, 0
      %s114 = sadd.s32 %s113, 1
      %s115 = scalar_select %p112, %s113, %s114
      %p118 = pneg %p112
      %p119 = scmp.eq.s32.totalorder %s13, 1
      %p120 = por %p118, %p119
      %p121 = scmp.ne.s32.totalorder %s113, %s116
      %p122 = scmp.eq.s32.totalorder %s13, 0
      %p123 = por %p121, %p122
      %p124 = scmp.ne.s32.totalorder %s113, %s116
      %p125 = scmp.eq.s32.totalorder %s18, 1
      %p126 = por %p124, %p125
      %p127 = scmp.ne.s32.totalorder %s116, %s117
      %p128 = scmp.eq.s32.totalorder %s18, 0
      %p129 = por %p127, %p128
      %p130 = scmp.ne.s32.totalorder %s116, %s117
      %p131 = scmp.eq.s32.totalorder %s19, 1
      %p132 = por %p130, %p131
      %p134 = scmp.ne.s32.totalorder %s117, %s133
      %p135 = scmp.eq.s32.totalorder %s19, 0
      %p136 = por %p134, %p135
      %p137 = scmp.le.s32.totalorder 1, %s13
      %p138 = scmp.lt.s32.totalorder %s13, 3
      %p139 = pnand %p137, %p138
      %p140 = pneg %p139
      // Predicated region
      $region9: #{mlp_forward.1} parent=5 // pred_check
        _
      $region10: #{mlp_forward.1} parent=5 // pred_check_branch
        %142 = sbr.rel (%p139) target = $region12
      $region11: #{mlp_forward.1} parent=5 // pred_region
        %s143 = ssub.s32 %s13, 1
        // Predicated region
        $region13: #{mlp_forward.1} parent=11 // pred_check
          %p144 = pneg %p51
        $region14: #{mlp_forward.1} parent=11 // pred_check_branch
          %146 = sbr.rel (%p144) target = $region16
        $region15: #{mlp_forward.1} parent=11 // pred_region
          %s147 = smul.u32 32, %s22
          %p148 = scmp.lt.s32.totalorder %s147, 31
          %s149 = scalar_select %p148, %s147, 31
          %s150 = smul.addr %s149, 2
          %s151 = smul.addr %s150, 4
          %s152 = scalar_lea.vmem %s0, %s151
          %s153 = smul.u32 32, %s22
        $region16: #{mlp_forward.1} parent=11 // pred_fallthru
          _
      $region12: #{mlp_forward.1} parent=5 // pred_fallthru
        _
      %p154 = scmp.lt.s32.totalorder %s13, 2
      // Predicated region
      $region17: #{mlp_forward.1} parent=5 // pred_check
        %p155 = pneg %p154
      $region18: #{mlp_forward.1} parent=5 // pred_check_branch
        %157 = sbr.rel (%p155) target = $region20
      $region19: #{mlp_forward.1} parent=5 // pred_region
        // Predicated region
        $region21: #{mlp_forward.1} parent=19 // pred_check
          %p158 = pneg %p71
        $region22: #{mlp_forward.1} parent=19 // pred_check_branch
          %160 = sbr.rel (%p158) target = $region24
        $region23: #{mlp_forward.1} parent=19 // pred_region
          %s161 = sand.u32 %s61, 1
          %s162 = scalar_lea.sflag [#allocation4], %s161
          %s163 = sand.u32 %s61, 1
          %s164 = smul.addr %s163, 512
          %s165 = scalar_lea.vmem [#allocation3], %s164
          %s167 = ssub.s32 8192, 8192
          %168 = vsyncadd %s162, %s167
          %s169 = smul.addr %s21, 128
          %s170 = smul.addr %s169, 64
          %s171 = scalar_lea.hbm %s1, %s170
          %s172 = sshll.u32 %s165, 4
          %s173 = int_to_ptr.vmem [resolvable:$true] %s172
          %178 = dma.hbm_to_vmem [thread:$0]  %s171, 8192, %s173, %s162, 256, 256, 16
        $region24: #{mlp_forward.1} parent=19 // pred_fallthru
          _
        // Predicated region
        $region25: #{mlp_forward.1} parent=19 // pred_check
          %p179 = pneg %p97
        $region26: #{mlp_forward.1} parent=19 // pred_check_branch
          %181 = sbr.rel (%p179) target = $region28
        $region27: #{mlp_forward.1} parent=19 // pred_region
          %s182 = smul.u32 32, %s21
          %p183 = scmp.lt.s32.totalorder %s182, 63
          %s184 = scalar_select %p183, %s182, 63
          %s185 = smul.addr %s184, 2
          %s186 = smul.addr %s185, 4
          %s187 = scalar_lea.vmem %s2, %s186
          %s188 = smul.u32 32, %s21
        $region28: #{mlp_forward.1} parent=19 // pred_fallthru
          _
      $region20: #{mlp_forward.1} parent=5 // pred_fallthru
        _
      %p189 = scmp.le.s32.totalorder 1, %s13
      %p190 = scmp.lt.s32.totalorder %s13, 3
      %p191 = pnand %p189, %p190
      %p192 = pneg %p191
      // Predicated region
      $region29: #{mlp_forward.1} parent=5 // pred_check
        _
      $region30: #{mlp_forward.1} parent=5 // pred_check_branch
        %194 = sbr.rel (%p191) target = $region32
      $region31: #{mlp_forward.1} parent=5 // pred_region
        %s195 = ssub.s32 %s13, 1
        %s196 = sand.u32 %s64, 1
        %s197 = scalar_lea.sflag [#allocation4], %s196
        %s198 = sand.u32 %s64, 1
        %s199 = smul.addr %s198, 512
        %s200 = scalar_lea.vmem [#allocation3], %s199
        // Predicated region
        $region33: #{mlp_forward.1} parent=31 // pred_check
          %p201 = pneg %p77
        $region34: #{mlp_forward.1} parent=31 // pred_check_branch
          %203 = sbr.rel (%p201) target = $region36
        $region35: #{mlp_forward.1} parent=31 // pred_region
          %204 = dma.done %s197, 8192
        $region36: #{mlp_forward.1} parent=31 // pred_fallthru
          _
        %s205 = smul.u32 32, %s22
        %p206 = scmp.lt.s32.totalorder %s205, 31
        %s207 = scalar_select %p206, %s205, 31
        %s208 = smul.addr %s207, 2
        %s209 = smul.addr %s208, 4
        %s210 = scalar_lea.vmem %s0, %s209
        %p211 = pneg %p51
        %p212 = pneg %p48
        %s213 = sand.u32 %s64, 1
        %s214 = scalar_lea.sflag [#allocation4], %s213
        %s215 = sand.u32 %s64, 1
        %s216 = smul.addr %s215, 512
        %s217 = scalar_lea.vmem [#allocation3], %s216
        %p218 = pneg %p77
        %p219 = pneg %p74
        %s220 = smul.u32 32, %s23
        %p221 = scmp.lt.s32.totalorder %s220, 63
        %s222 = scalar_select %p221, %s220, 63
        %s223 = smul.addr %s222, 2
        %s224 = smul.addr %s223, 4
        %s225 = scalar_lea.vmem %s2, %s224
        %p226 = pneg %p103
        %p227 = pneg %p100
        %p228 = pneg %p129
        %p229 = pneg %p126
        %s230 = smul.u32 32, %s22
        %p231 = scmp.lt.s32.totalorder %s230, 31
        %s232 = scalar_select %p231, %s230, 31
        %s233 = smul.addr %s232, 2
        %s234 = smul.addr %s233, 4
        %s235 = scalar_lea.vmem %s0, %s234
        %s236 = smul.u32 32, %s22
        %s237 = smul.u32 32, %s23
        %p238 = scmp.lt.s32.totalorder %s237, 63
        %s239 = scalar_select %p238, %s237, 63
        %s240 = smul.addr %s239, 2
        %s241 = smul.addr %s240, 4
        %s242 = scalar_lea.vmem %s2, %s241
        %s243 = smul.u32 32, %s23
        %s244 = smul.u32 32, %s22
        %p245 = scmp.eq.s32.totalorder %s23, 0
        // Predicated region
        $region37: #{mlp_forward.1} parent=31 // pred_check
          %p246 = pneg %p245
        $region38: #{mlp_forward.1} parent=31 // pred_check_branch
          %248 = sbr.rel (%p246) target = $region40
        $region39: #{mlp_forward.1} parent=31 // pred_region
          %249 = vst [vmem:[#allocation2] sm:$0xff] 0.0
          %250 = vst [vmem:[#allocation2 + $0x8] sm:$0xff] 0.0
          %251 = vst [vmem:[#allocation2 + $0x10] sm:$0xff] 0.0
          %252 = vst [vmem:[#allocation2 + $0x18] sm:$0xff] 0.0
          %253 = vst [vmem:[#allocation2 + $0x20] sm:$0xff] 0.0
          %254 = vst [vmem:[#allocation2 + $0x28] sm:$0xff] 0.0
          %255 = vst [vmem:[#allocation2 + $0x30] sm:$0xff] 0.0
          %256 = vst [vmem:[#allocation2 + $0x38] sm:$0xff] 0.0
          %257 = vst [vmem:[#allocation2 + $0x40] sm:$0xff] 0.0
          %258 = vst [vmem:[#allocation2 + $0x48] sm:$0xff] 0.0
          %259 = vst [vmem:[#allocation2 + $0x50] sm:$0xff] 0.0
          %260 = vst [vmem:[#allocation2 + $0x58] sm:$0xff] 0.0
          %261 = vst [vmem:[#allocation2 + $0x60] sm:$0xff] 0.0
          %262 = vst [vmem:[#allocation2 + $0x68] sm:$0xff] 0.0
          %263 = vst [vmem:[#allocation2 + $0x70] sm:$0xff] 0.0
          %264 = vst [vmem:[#allocation2 + $0x78] sm:$0xff] 0.0
          %265 = vst [vmem:[#allocation2 + $0x80] sm:$0xff] 0.0
          %266 = vst [vmem:[#allocation2 + $0x88] sm:$0xff] 0.0
          %267 = vst [vmem:[#allocation2 + $0x90] sm:$0xff] 0.0
          %268 = vst [vmem:[#allocation2 + $0x98] sm:$0xff] 0.0
          %269 = vst [vmem:[#allocation2 + $0xa0] sm:$0xff] 0.0
          %270 = vst [vmem:[#allocation2 + $0xa8] sm:$0xff] 0.0
          %271 = vst [vmem:[#allocation2 + $0xb0] sm:$0xff] 0.0
          %272 = vst [vmem:[#allocation2 + $0xb8] sm:$0xff] 0.0
          %273 = vst [vmem:[#allocation2 + $0xc0] sm:$0xff] 0.0
          %274 = vst [vmem:[#allocation2 + $0xc8] sm:$0xff] 0.0
          %275 = vst [vmem:[#allocation2 + $0xd0] sm:$0xff] 0.0
          %276 = vst [vmem:[#allocation2 + $0xd8] sm:$0xff] 0.0
          %277 = vst [vmem:[#allocation2 + $0xe0] sm:$0xff] 0.0
          %278 = vst [vmem:[#allocation2 + $0xe8] sm:$0xff] 0.0
          %279 = vst [vmem:[#allocation2 + $0xf0] sm:$0xff] 0.0
          %280 = vst [vmem:[#allocation2 + $0xf8] sm:$0xff] 0.0
          %281 = vst [vmem:[#allocation2 + $0x100] sm:$0xff] 0.0
          %282 = vst [vmem:[#allocation2 + $0x108] sm:$0xff] 0.0
          %283 = vst [vmem:[#allocation2 + $0x110] sm:$0xff] 0.0
          %284 = vst [vmem:[#allocation2 + $0x118] sm:$0xff] 0.0
          %285 = vst [vmem:[#allocation2 + $0x120] sm:$0xff] 0.0
          %286 = vst [vmem:[#allocation2 + $0x128] sm:$0xff] 0.0
          %287 = vst [vmem:[#allocation2 + $0x130] sm:$0xff] 0.0
          %288 = vst [vmem:[#allocation2 + $0x138] sm:$0xff] 0.0
          %289 = vst [vmem:[#allocation2 + $0x140] sm:$0xff] 0.0
          %290 = vst [vmem:[#allocation2 + $0x148] sm:$0xff] 0.0
          %291 = vst [vmem:[#allocation2 + $0x150] sm:$0xff] 0.0
          %292 = vst [vmem:[#allocation2 + $0x158] sm:$0xff] 0.0
          %293 = vst [vmem:[#allocation2 + $0x160] sm:$0xff] 0.0
          %294 = vst [vmem:[#allocation2 + $0x168] sm:$0xff] 0.0
          %295 = vst [vmem:[#allocation2 + $0x170] sm:$0xff] 0.0
          %296 = vst [vmem:[#allocation2 + $0x178] sm:$0xff] 0.0
          %297 = vst [vmem:[#allocation2 + $0x180] sm:$0xff] 0.0
          %298 = vst [vmem:[#allocation2 + $0x188] sm:$0xff] 0.0
          %299 = vst [vmem:[#allocation2 + $0x190] sm:$0xff] 0.0
          %300 = vst [vmem:[#allocation2 + $0x198] sm:$0xff] 0.0
          %301 = vst [vmem:[#allocation2 + $0x1a0] sm:$0xff] 0.0
          %302 = vst [vmem:[#allocation2 + $0x1a8] sm:$0xff] 0.0
          %303 = vst [vmem:[#allocation2 + $0x1b0] sm:$0xff] 0.0
          %304 = vst [vmem:[#allocation2 + $0x1b8] sm:$0xff] 0.0
          %305 = vst [vmem:[#allocation2 + $0x1c0] sm:$0xff] 0.0
          %306 = vst [vmem:[#allocation2 + $0x1c8] sm:$0xff] 0.0
          %307 = vst [vmem:[#allocation2 + $0x1d0] sm:$0xff] 0.0
          %308 = vst [vmem:[#allocation2 + $0x1d8] sm:$0xff] 0.0
          %309 = vst [vmem:[#allocation2 + $0x1e0] sm:$0xff] 0.0
          %310 = vst [vmem:[#allocation2 + $0x1e8] sm:$0xff] 0.0
          %311 = vst [vmem:[#allocation2 + $0x1f0] sm:$0xff] 0.0
          %312 = vst [vmem:[#allocation2 + $0x1f8] sm:$0xff] 0.0
        $region40: #{mlp_forward.1} parent=31 // pred_fallthru
          _
        %v313 = vld [vmem:[%s235] sm:$0xff]
        %v314 = vld [vmem:[%s235 + $0x8] sm:$0xff]
        %v315 = vld [vmem:[%s235 + $0x10] sm:$0xff]
        %v316 = vld [vmem:[%s235 + $0x18] sm:$0xff]
        %v317 = vld [vmem:[%s235 + $0x20] sm:$0xff]
        %v318 = vld [vmem:[%s235 + $0x28] sm:$0xff]
        %v319 = vld [vmem:[%s235 + $0x30] sm:$0xff]
        %v320 = vld [vmem:[%s235 + $0x38] sm:$0xff]
        %v321 = vld [vmem:[%s235 + $0x40] sm:$0xff]
        %v322 = vld [vmem:[%s235 + $0x48] sm:$0xff]
        %v323 = vld [vmem:[%s235 + $0x50] sm:$0xff]
        %v324 = vld [vmem:[%s235 + $0x58] sm:$0xff]
        %v325 = vld [vmem:[%s235 + $0x60] sm:$0xff]
        %v326 = vld [vmem:[%s235 + $0x68] sm:$0xff]
        %v327 = vld [vmem:[%s235 + $0x70] sm:$0xff]
        %v328 = vld [vmem:[%s235 + $0x78] sm:$0xff]
        %v329 = vld [vmem:[%s235 + $0x80] sm:$0xff]
        %v330 = vld [vmem:[%s235 + $0x88] sm:$0xff]
        %v331 = vld [vmem:[%s235 + $0x90] sm:$0xff]
        %v332 = vld [vmem:[%s235 + $0x98] sm:$0xff]
        %v333 = vld [vmem:[%s235 + $0xa0] sm:$0xff]
        %v334 = vld [vmem:[%s235 + $0xa8] sm:$0xff]
        %v335 = vld [vmem:[%s235 + $0xb0] sm:$0xff]
        %v336 = vld [vmem:[%s235 + $0xb8] sm:$0xff]
        %v337 = vld [vmem:[%s235 + $0xc0] sm:$0xff]
        %v338 = vld [vmem:[%s235 + $0xc8] sm:$0xff]
        %v339 = vld [vmem:[%s235 + $0xd0] sm:$0xff]
        %v340 = vld [vmem:[%s235 + $0xd8] sm:$0xff]
        %v341 = vld [vmem:[%s235 + $0xe0] sm:$0xff]
        %v342 = vld [vmem:[%s235 + $0xe8] sm:$0xff]
        %v343 = vld [vmem:[%s235 + $0xf0] sm:$0xff]
        %v344 = vld [vmem:[%s235 + $0xf8] sm:$0xff]
        %v345 = vld [vmem:[%s200] sm:$0xff]
        %v346 = vld [vmem:[%s200 + $0x8] sm:$0xff]
        %v347 = vld [vmem:[%s200 + $0x10] sm:$0xff]
        %v348 = vld [vmem:[%s200 + $0x18] sm:$0xff]
        %v349 = vld [vmem:[%s200 + $0x20] sm:$0xff]
        %v350 = vld [vmem:[%s200 + $0x28] sm:$0xff]
        %v351 = vld [vmem:[%s200 + $0x30] sm:$0xff]
        %v352 = vld [vmem:[%s200 + $0x38] sm:$0xff]
        %v353 = vld [vmem:[%s200 + $0x40] sm:$0xff]
        %v354 = vld [vmem:[%s200 + $0x48] sm:$0xff]
        %v355 = vld [vmem:[%s200 + $0x50] sm:$0xff]
        %v356 = vld [vmem:[%s200 + $0x58] sm:$0xff]
        %v357 = vld [vmem:[%s200 + $0x60] sm:$0xff]
        %v358 = vld [vmem:[%s200 + $0x68] sm:$0xff]
        %v359 = vld [vmem:[%s200 + $0x70] sm:$0xff]
        %v360 = vld [vmem:[%s200 + $0x78] sm:$0xff]
        %v361 = vld [vmem:[%s200 + $0x80] sm:$0xff]
        %v362 = vld [vmem:[%s200 + $0x88] sm:$0xff]
        %v363 = vld [vmem:[%s200 + $0x90] sm:$0xff]
        %v364 = vld [vmem:[%s200 + $0x98] sm:$0xff]
        %v365 = vld [vmem:[%s200 + $0xa0] sm:$0xff]
        %v366 = vld [vmem:[%s200 + $0xa8] sm:$0xff]
        %v367 = vld [vmem:[%s200 + $0xb0] sm:$0xff]
        %v368 = vld [vmem:[%s200 + $0xb8] sm:$0xff]
        %v369 = vld [vmem:[%s200 + $0xc0] sm:$0xff]
        %v370 = vld [vmem:[%s200 + $0xc8] sm:$0xff]
        %v371 = vld [vmem:[%s200 + $0xd0] sm:$0xff]
        %v372 = vld [vmem:[%s200 + $0xd8] sm:$0xff]
        %v373 = vld [vmem:[%s200 + $0xe0] sm:$0xff]
        %v374 = vld [vmem:[%s200 + $0xe8] sm:$0xff]
        %v375 = vld [vmem:[%s200 + $0xf0] sm:$0xff]
        %v376 = vld [vmem:[%s200 + $0xf8] sm:$0xff]
        %v377 = vld [vmem:[%s200 + $0x100] sm:$0xff]
        %v378 = vld [vmem:[%s200 + $0x108] sm:$0xff]
        %v379 = vld [vmem:[%s200 + $0x110] sm:$0xff]
        %v380 = vld [vmem:[%s200 + $0x118] sm:$0xff]
        %v381 = vld [vmem:[%s200 + $0x120] sm:$0xff]
        %v382 = vld [vmem:[%s200 + $0x128] sm:$0xff]
        %v383 = vld [vmem:[%s200 + $0x130] sm:$0xff]
        %v384 = vld [vmem:[%s200 + $0x138] sm:$0xff]
        %v385 = vld [vmem:[%s200 + $0x140] sm:$0xff]
        %v386 = vld [vmem:[%s200 + $0x148] sm:$0xff]
        %v387 = vld [vmem:[%s200 + $0x150] sm:$0xff]
        %v388 = vld [vmem:[%s200 + $0x158] sm:$0xff]
        %v389 = vld [vmem:[%s200 + $0x160] sm:$0xff]
        %v390 = vld [vmem:[%s200 + $0x168] sm:$0xff]
        %v391 = vld [vmem:[%s200 + $0x170] sm:$0xff]
        %v392 = vld [vmem:[%s200 + $0x178] sm:$0xff]
        %v393 = vld [vmem:[%s200 + $0x180] sm:$0xff]
        %v394 = vld [vmem:[%s200 + $0x188] sm:$0xff]
        %v395 = vld [vmem:[%s200 + $0x190] sm:$0xff]
        %v396 = vld [vmem:[%s200 + $0x198] sm:$0xff]
        %v397 = vld [vmem:[%s200 + $0x1a0] sm:$0xff]
        %v398 = vld [vmem:[%s200 + $0x1a8] sm:$0xff]
        %v399 = vld [vmem:[%s200 + $0x1b0] sm:$0xff]
        %v400 = vld [vmem:[%s200 + $0x1b8] sm:$0xff]
        %v401 = vld [vmem:[%s200 + $0x1c0] sm:$0xff]
        %v402 = vld [vmem:[%s200 + $0x1c8] sm:$0xff]
        %v403 = vld [vmem:[%s200 + $0x1d0] sm:$0xff]
        %v404 = vld [vmem:[%s200 + $0x1d8] sm:$0xff]
        %v405 = vld [vmem:[%s200 + $0x1e0] sm:$0xff]
        %v406 = vld [vmem:[%s200 + $0x1e8] sm:$0xff]
        %v407 = vld [vmem:[%s200 + $0x1f0] sm:$0xff]
        %v408 = vld [vmem:[%s200 + $0x1f8] sm:$0xff]
        %v441 = vunpack.c.l.b16 %v313
        %v442 = vunpack.c.h.b16 %v313
        %v443 = vunpack.c.l.b16 %v314
        %v444 = vunpack.c.h.b16 %v314
        %v445 = vunpack.c.l.b16 %v315
        %v446 = vunpack.c.h.b16 %v315
        %v447 = vunpack.c.l.b16 %v316
        %v448 = vunpack.c.h.b16 %v316
        %v449 = vunpack.c.l.b16 %v317
        %v450 = vunpack.c.h.b16 %v317
        %v451 = vunpack.c.l.b16 %v318
        %v452 = vunpack.c.h.b16 %v318
        %v453 = vunpack.c.l.b16 %v319
        %v454 = vunpack.c.h.b16 %v319
        %v455 = vunpack.c.l.b16 %v320
        %v456 = vunpack.c.h.b16 %v320
        %v457 = vunpack.c.l.b16 %v321
        %v458 = vunpack.c.h.b16 %v321
        %v459 = vunpack.c.l.b16 %v322
        %v460 = vunpack.c.h.b16 %v322
        %v461 = vunpack.c.l.b16 %v323
        %v462 = vunpack.c.h.b16 %v323
        %v463 = vunpack.c.l.b16 %v324
        %v464 = vunpack.c.h.b16 %v324
        %v465 = vunpack.c.l.b16 %v325
        %v466 = vunpack.c.h.b16 %v325
        %v467 = vunpack.c.l.b16 %v326
        %v468 = vunpack.c.h.b16 %v326
        %v469 = vunpack.c.l.b16 %v327
        %v470 = vunpack.c.h.b16 %v327
        %v471 = vunpack.c.l.b16 %v328
        %v472 = vunpack.c.h.b16 %v328
        %v473 = vunpack.c.l.b16 %v329
        %v474 = vunpack.c.h.b16 %v329
        %v475 = vunpack.c.l.b16 %v330
        %v476 = vunpack.c.h.b16 %v330
        %v477 = vunpack.c.l.b16 %v331
        %v478 = vunpack.c.h.b16 %v331
        %v479 = vunpack.c.l.b16 %v332
        %v480 = vunpack.c.h.b16 %v332
        %v481 = vunpack.c.l.b16 %v333
        %v482 = vunpack.c.h.b16 %v333
        %v483 = vunpack.c.l.b16 %v334
        %v484 = vunpack.c.h.b16 %v334
        %v485 = vunpack.c.l.b16 %v335
        %v486 = vunpack.c.h.b16 %v335
        %v487 = vunpack.c.l.b16 %v336
        %v488 = vunpack.c.h.b16 %v336
        %v489 = vunpack.c.l.b16 %v337
        %v490 = vunpack.c.h.b16 %v337
        %v491 = vunpack.c.l.b16 %v338
        %v492 = vunpack.c.h.b16 %v338
        %v493 = vunpack.c.l.b16 %v339
        %v494 = vunpack.c.h.b16 %v339
        %v495 = vunpack.c.l.b16 %v340
        %v496 = vunpack.c.h.b16 %v340
        %v497 = vunpack.c.l.b16 %v341
        %v498 = vunpack.c.h.b16 %v341
        %v499 = vunpack.c.l.b16 %v342
        %v500 = vunpack.c.h.b16 %v342
        %v501 = vunpack.c.l.b16 %v343
        %v502 = vunpack.c.h.b16 %v343
        %v503 = vunpack.c.l.b16 %v344
        %v504 = vunpack.c.h.b16 %v344
        %v505 = vpack.c.b16 %v443, %v441
        %v506 = vpack.c.b16 %v444, %v442
        %v507 = vpack.c.b16 %v447, %v445
        %v508 = vpack.c.b16 %v448, %v446
        %v509 = vpack.c.b16 %v451, %v449
        %v510 = vpack.c.b16 %v452, %v450
        %v511 = vpack.c.b16 %v455, %v453
        %v512 = vpack.c.b16 %v456, %v454
        %v513 = vpack.c.b16 %v459, %v457
        %v514 = vpack.c.b16 %v460, %v458
        %v515 = vpack.c.b16 %v463, %v461
        %v516 = vpack.c.b16 %v464, %v462
        %v517 = vpack.c.b16 %v467, %v465
        %v518 = vpack.c.b16 %v468, %v466
        %v519 = vpack.c.b16 %v471, %v469
        %v520 = vpack.c.b16 %v472, %v470
        %v521 = vpack.c.b16 %v475, %v473
        %v522 = vpack.c.b16 %v476, %v474
        %v523 = vpack.c.b16 %v479, %v477
        %v524 = vpack.c.b16 %v480, %v478
        %v525 = vpack.c.b16 %v483, %v481
        %v526 = vpack.c.b16 %v484, %v482
        %v527 = vpack.c.b16 %v487, %v485
        %v528 = vpack.c.b16 %v488, %v486
        %v529 = vpack.c.b16 %v491, %v489
        %v530 = vpack.c.b16 %v492, %v490
        %v531 = vpack.c.b16 %v495, %v493
        %v532 = vpack.c.b16 %v496, %v494
        %v533 = vpack.c.b16 %v499, %v497
        %v534 = vpack.c.b16 %v500, %v498
        %v535 = vpack.c.b16 %v503, %v501
        %v536 = vpack.c.b16 %v504, %v502
        %v633 = vunpack.c.l.b16 %v345
        %v634 = vunpack.c.h.b16 %v345
        %v635 = vunpack.c.l.b16 %v346
        %v636 = vunpack.c.h.b16 %v346
        %v637 = vunpack.c.l.b16 %v347
        %v638 = vunpack.c.h.b16 %v347
        %v639 = vunpack.c.l.b16 %v348
        %v640 = vunpack.c.h.b16 %v348
        %v641 = vunpack.c.l.b16 %v349
        %v642 = vunpack.c.h.b16 %v349
        %v643 = vunpack.c.l.b16 %v350
        %v644 = vunpack.c.h.b16 %v350
        %v645 = vunpack.c.l.b16 %v351
        %v646 = vunpack.c.h.b16 %v351
        %v647 = vunpack.c.l.b16 %v352
        %v648 = vunpack.c.h.b16 %v352
        %v649 = vunpack.c.l.b16 %v353
        %v650 = vunpack.c.h.b16 %v353
        %v651 = vunpack.c.l.b16 %v354
        %v652 = vunpack.c.h.b16 %v354
        %v653 = vunpack.c.l.b16 %v355
        %v654 = vunpack.c.h.b16 %v355
        %v655 = vunpack.c.l.b16 %v356
        %v656 = vunpack.c.h.b16 %v356
        %v657 = vunpack.c.l.b16 %v357
        %v658 = vunpack.c.h.b16 %v357
        %v659 = vunpack.c.l.b16 %v358
        %v660 = vunpack.c.h.b16 %v358
        %v661 = vunpack.c.l.b16 %v359
        %v662 = vunpack.c.h.b16 %v359
        %v663 = vunpack.c.l.b16 %v360
        %v664 = vunpack.c.h.b16 %v360
        %v665 = vunpack.c.l.b16 %v361
        %v666 = vunpack.c.h.b16 %v361
        %v667 = vunpack.c.l.b16 %v362
        %v668 = vunpack.c.h.b16 %v362
        %v669 = vunpack.c.l.b16 %v363
        %v670 = vunpack.c.h.b16 %v363
        %v671 = vunpack.c.l.b16 %v364
        %v672 = vunpack.c.h.b16 %v364
        %v673 = vunpack.c.l.b16 %v365
        %v674 = vunpack.c.h.b16 %v365
        %v675 = vunpack.c.l.b16 %v366
        %v676 = vunpack.c.h.b16 %v366
        %v677 = vunpack.c.l.b16 %v367
        %v678 = vunpack.c.h.b16 %v367
        %v679 = vunpack.c.l.b16 %v368
        %v680 = vunpack.c.h.b16 %v368
        %v681 = vunpack.c.l.b16 %v369
        %v682 = vunpack.c.h.b16 %v369
        %v683 = vunpack.c.l.b16 %v370
        %v684 = vunpack.c.h.b16 %v370
        %v685 = vunpack.c.l.b16 %v371
        %v686 = vunpack.c.h.b16 %v371
        %v687 = vunpack.c.l.b16 %v372
        %v688 = vunpack.c.h.b16 %v372
        %v689 = vunpack.c.l.b16 %v373
        %v690 = vunpack.c.h.b16 %v373
        %v691 = vunpack.c.l.b16 %v374
        %v692 = vunpack.c.h.b16 %v374
        %v693 = vunpack.c.l.b16 %v375
        %v694 = vunpack.c.h.b16 %v375
        %v695 = vunpack.c.l.b16 %v376
        %v696 = vunpack.c.h.b16 %v376
        %v697 = vunpack.c.l.b16 %v377
        %v698 = vunpack.c.h.b16 %v377
        %v699 = vunpack.c.l.b16 %v378
        %v700 = vunpack.c.h.b16 %v378
        %v701 = vunpack.c.l.b16 %v379
        %v702 = vunpack.c.h.b16 %v379
        %v703 = vunpack.c.l.b16 %v380
        %v704 = vunpack.c.h.b16 %v380
        %v705 = vunpack.c.l.b16 %v381
        %v706 = vunpack.c.h.b16 %v381
        %v707 = vunpack.c.l.b16 %v382
        %v708 = vunpack.c.h.b16 %v382
        %v709 = vunpack.c.l.b16 %v383
        %v710 = vunpack.c.h.b16 %v383
        %v711 = vunpack.c.l.b16 %v384
        %v712 = vunpack.c.h.b16 %v384
        %v713 = vunpack.c.l.b16 %v385
        %v714 = vunpack.c.h.b16 %v385
        %v715 = vunpack.c.l.b16 %v386
        %v716 = vunpack.c.h.b16 %v386
        %v717 = vunpack.c.l.b16 %v387
        %v718 = vunpack.c.h.b16 %v387
        %v719 = vunpack.c.l.b16 %v388
        %v720 = vunpack.c.h.b16 %v388
        %v721 = vunpack.c.l.b16 %v389
        %v722 = vunpack.c.h.b16 %v389
        %v723 = vunpack.c.l.b16 %v390
        %v724 = vunpack.c.h.b16 %v390
        %v725 = vunpack.c.l.b16 %v391
        %v726 = vunpack.c.h.b16 %v391
        %v727 = vunpack.c.l.b16 %v392
        %v728 = vunpack.c.h.b16 %v392
        %v729 = vunpack.c.l.b16 %v393
        %v730 = vunpack.c.h.b16 %v393
        %v731 = vunpack.c.l.b16 %v394
        %v732 = vunpack.c.h.b16 %v394
        %v733 = vunpack.c.l.b16 %v395
        %v734 = vunpack.c.h.b16 %v395
        %v735 = vunpack.c.l.b16 %v396
        %v736 = vunpack.c.h.b16 %v396
        %v737 = vunpack.c.l.b16 %v397
        %v738 = vunpack.c.h.b16 %v397
        %v739 = vunpack.c.l.b16 %v398
        %v740 = vunpack.c.h.b16 %v398
        %v741 = vunpack.c.l.b16 %v399
        %v742 = vunpack.c.h.b16 %v399
        %v743 = vunpack.c.l.b16 %v400
        %v744 = vunpack.c.h.b16 %v400
        %v745 = vunpack.c.l.b16 %v401
        %v746 = vunpack.c.h.b16 %v401
        %v747 = vunpack.c.l.b16 %v402
        %v748 = vunpack.c.h.b16 %v402
        %v749 = vunpack.c.l.b16 %v403
        %v750 = vunpack.c.h.b16 %v403
        %v751 = vunpack.c.l.b16 %v404
        %v752 = vunpack.c.h.b16 %v404
        %v753 = vunpack.c.l.b16 %v405
        %v754 = vunpack.c.h.b16 %v405
        %v755 = vunpack.c.l.b16 %v406
        %v756 = vunpack.c.h.b16 %v406
        %v757 = vunpack.c.l.b16 %v407
        %v758 = vunpack.c.h.b16 %v407
        %v759 = vunpack.c.l.b16 %v408
        %v760 = vunpack.c.h.b16 %v408
        %v761 = vpack.c.b16 %v637, %v633
        %v762 = vpack.c.b16 %v638, %v634
        %v763 = vpack.c.b16 %v639, %v635
        %v764 = vpack.c.b16 %v640, %v636
        %v765 = vpack.c.b16 %v645, %v641
        %v766 = vpack.c.b16 %v646, %v642
        %v767 = vpack.c.b16 %v647, %v643
        %v768 = vpack.c.b16 %v648, %v644
        %v769 = vpack.c.b16 %v653, %v649
        %v770 = vpack.c.b16 %v654, %v650
        %v771 = vpack.c.b16 %v655, %v651
        %v772 = vpack.c.b16 %v656, %v652
        %v773 = vpack.c.b16 %v661, %v657
        %v774 = vpack.c.b16 %v662, %v658
        %v775 = vpack.c.b16 %v663, %v659
        %v776 = vpack.c.b16 %v664, %v660
        %v777 = vpack.c.b16 %v669, %v665
        %v778 = vpack.c.b16 %v670, %v666
        %v779 = vpack.c.b16 %v671, %v667
        %v780 = vpack.c.b16 %v672, %v668
        %v781 = vpack.c.b16 %v677, %v673
        %v782 = vpack.c.b16 %v678, %v674
        %v783 = vpack.c.b16 %v679, %v675
        %v784 = vpack.c.b16 %v680, %v676
        %v785 = vpack.c.b16 %v685, %v681
        %v786 = vpack.c.b16 %v686, %v682
        %v787 = vpack.c.b16 %v687, %v683
        %v788 = vpack.c.b16 %v688, %v684
        %v789 = vpack.c.b16 %v693, %v689
        %v790 = vpack.c.b16 %v694, %v690
        %v791 = vpack.c.b16 %v695, %v691
        %v792 = vpack.c.b16 %v696, %v692
        %v793 = vpack.c.b16 %v701, %v697
        %v794 = vpack.c.b16 %v702, %v698
        %v795 = vpack.c.b16 %v703, %v699
        %v796 = vpack.c.b16 %v704, %v700
        %v797 = vpack.c.b16 %v709, %v705
        %v798 = vpack.c.b16 %v710, %v706
        %v799 = vpack.c.b16 %v711, %v707
        %v800 = vpack.c.b16 %v712, %v708
        %v801 = vpack.c.b16 %v717, %v713
        %v802 = vpack.c.b16 %v718, %v714
        %v803 = vpack.c.b16 %v719, %v715
        %v804 = vpack.c.b16 %v720, %v716
        %v805 = vpack.c.b16 %v725, %v721
        %v806 = vpack.c.b16 %v726, %v722
        %v807 = vpack.c.b16 %v727, %v723
        %v808 = vpack.c.b16 %v728, %v724
        %v809 = vpack.c.b16 %v733, %v729
        %v810 = vpack.c.b16 %v734, %v730
        %v811 = vpack.c.b16 %v735, %v731
        %v812 = vpack.c.b16 %v736, %v732
        %v813 = vpack.c.b16 %v741, %v737
        %v814 = vpack.c.b16 %v742, %v738
        %v815 = vpack.c.b16 %v743, %v739
        %v816 = vpack.c.b16 %v744, %v740
        %v817 = vpack.c.b16 %v749, %v745
        %v818 = vpack.c.b16 %v750, %v746
        %v819 = vpack.c.b16 %v751, %v747
        %v820 = vpack.c.b16 %v752, %v748
        %v821 = vpack.c.b16 %v757, %v753
        %v822 = vpack.c.b16 %v758, %v754
        %v823 = vpack.c.b16 %v759, %v755
        %v824 = vpack.c.b16 %v760, %v756
        %889 = vmatprep.subr.bf16.mxu0 %v790
        %890 = vmatpush1.bf16.msra.mxu0 %v789
        %891 = vmatprep.subr.bf16.mxu0 %v786
        %892 = vmatpush1.bf16.msra.mxu0 %v785
        %893 = vmatprep.subr.bf16.mxu0 %v782
        %894 = vmatpush1.bf16.msra.mxu0 %v781
        %895 = vmatprep.subr.bf16.mxu0 %v778
        %896 = vmatpush1.bf16.msra.mxu0 %v777
        %897 = vmatprep.subr.bf16.mxu0 %v774
        %898 = vmatpush1.bf16.msra.mxu0 %v773
        %899 = vmatprep.subr.bf16.mxu0 %v770
        %900 = vmatpush1.bf16.msra.mxu0 %v769
        %901 = vmatprep.subr.bf16.mxu0 %v766
        %902 = vmatpush1.bf16.msra.mxu0 %v765
        %903 = vmatprep.subr.bf16.mxu0 %v762
        %904 = vmatpush1.bf16.msra.mxu0 %v761
        %905 = vmatprep.subr.bf16.mxu0 %v822
        %906 = vmatpush2.bf16.msra.mxu0 %v821
        %907 = vmatprep.subr.bf16.mxu0 %v818
        %908 = vmatpush2.bf16.msra.mxu0 %v817
        %909 = vmatprep.subr.bf16.mxu0 %v814
        %910 = vmatpush2.bf16.msra.mxu0 %v813
        %911 = vmatprep.subr.bf16.mxu0 %v810
        %912 = vmatpush2.bf16.msra.mxu0 %v809
        %913 = vmatprep.subr.bf16.mxu0 %v806
        %914 = vmatpush2.bf16.msra.mxu0 %v805
        %915 = vmatprep.subr.bf16.mxu0 %v802
        %916 = vmatpush2.bf16.msra.mxu0 %v801
        %917 = vmatprep.subr.bf16.mxu0 %v798
        %918 = vmatpush2.bf16.msra.mxu0 %v797
        %919 = vmatprep.subr.bf16.mxu0 %v794
        %920 = vmatpush2.bf16.msra.mxu0 %v793
        %921 = vmatprep.mubr.bf16.mxu0 %v506
        %922 = vmatmul.mubr.bf16.gmra.mxu0 %v505
        %v923 = vpop.f32.mrf.mxu0
        %v924 = vadd.f32 0.0, %v923
        %v925 = vpop.f32.mrf.mxu0
        %v926 = vadd.f32 0.0, %v925
        %v927 = vpop.f32.mrf.mxu0
        %v928 = vadd.f32 0.0, %v927
        %v929 = vpop.f32.mrf.mxu0
        %v930 = vadd.f32 0.0, %v929
        %931 = vmatprep.mubr.bf16.mxu0 %v508
        %932 = vmatmul.mubr.bf16.gmra.mxu0 %v507
        %v933 = vpop.f32.mrf.mxu0
        %v934 = vadd.f32 0.0, %v933
        %v935 = vpop.f32.mrf.mxu0
        %v936 = vadd.f32 0.0, %v935
        %v937 = vpop.f32.mrf.mxu0
        %v938 = vadd.f32 0.0, %v937
        %v939 = vpop.f32.mrf.mxu0
        %v940 = vadd.f32 0.0, %v939
        %941 = vmatprep.mubr.bf16.mxu0 %v510
        %942 = vmatmul.mubr.bf16.gmra.mxu0 %v509
        %v943 = vpop.f32.mrf.mxu0
        %v944 = vadd.f32 0.0, %v943
        %v945 = vpop.f32.mrf.mxu0
        %v946 = vadd.f32 0.0, %v945
        %v947 = vpop.f32.mrf.mxu0
        %v948 = vadd.f32 0.0, %v947
        %v949 = vpop.f32.mrf.mxu0
        %v950 = vadd.f32 0.0, %v949
        %951 = vmatprep.mubr.bf16.mxu0 %v512
        %952 = vmatmul.mubr.bf16.gmra.mxu0 %v511
        %v953 = vpop.f32.mrf.mxu0
        %v954 = vadd.f32 0.0, %v953
        %v955 = vpop.f32.mrf.mxu0
        %v956 = vadd.f32 0.0, %v955
        %v957 = vpop.f32.mrf.mxu0
        %v958 = vadd.f32 0.0, %v957
        %v959 = vpop.f32.mrf.mxu0
        %v960 = vadd.f32 0.0, %v959
        %961 = vmatprep.mubr.bf16.mxu0 %v514
        %962 = vmatmul.mubr.bf16.gmra.mxu0 %v513
        %v963 = vpop.f32.mrf.mxu0
        %v964 = vadd.f32 0.0, %v963
        %v965 = vpop.f32.mrf.mxu0
        %v966 = vadd.f32 0.0, %v965
        %v967 = vpop.f32.mrf.mxu0
        %v968 = vadd.f32 0.0, %v967
        %v969 = vpop.f32.mrf.mxu0
        %v970 = vadd.f32 0.0, %v969
        %971 = vmatprep.mubr.bf16.mxu0 %v516
        %972 = vmatmul.mubr.bf16.gmra.mxu0 %v515
        %v973 = vpop.f32.mrf.mxu0
        %v974 = vadd.f32 0.0, %v973
        %v975 = vpop.f32.mrf.mxu0
        %v976 = vadd.f32 0.0, %v975
        %v977 = vpop.f32.mrf.mxu0
        %v978 = vadd.f32 0.0, %v977
        %v979 = vpop.f32.mrf.mxu0
        %v980 = vadd.f32 0.0, %v979
        %981 = vmatprep.mubr.bf16.mxu0 %v518
        %982 = vmatmul.mubr.bf16.gmra.mxu0 %v517
        %v983 = vpop.f32.mrf.mxu0
        %v984 = vadd.f32 0.0, %v983
        %v985 = vpop.f32.mrf.mxu0
        %v986 = vadd.f32 0.0, %v985
        %v987 = vpop.f32.mrf.mxu0
        %v988 = vadd.f32 0.0, %v987
        %v989 = vpop.f32.mrf.mxu0
        %v990 = vadd.f32 0.0, %v989
        %991 = vmatprep.mubr.bf16.mxu0 %v520
        %992 = vmatmul.mubr.bf16.gmra.mxu0 %v519
        %v993 = vpop.f32.mrf.mxu0
        %v994 = vadd.f32 0.0, %v993
        %v995 = vpop.f32.mrf.mxu0
        %v996 = vadd.f32 0.0, %v995
        %v997 = vpop.f32.mrf.mxu0
        %v998 = vadd.f32 0.0, %v997
        %v999 = vpop.f32.mrf.mxu0
        %v1000 = vadd.f32 0.0, %v999
        %1001 = vmatprep.mubr.bf16.mxu0 %v522
        %1002 = vmatmul.mubr.bf16.gmra.mxu0 %v521
        %v1003 = vpop.f32.mrf.mxu0
        %v1004 = vadd.f32 0.0, %v1003
        %v1005 = vpop.f32.mrf.mxu0
        %v1006 = vadd.f32 0.0, %v1005
        %v1007 = vpop.f32.mrf.mxu0
        %v1008 = vadd.f32 0.0, %v1007
        %v1009 = vpop.f32.mrf.mxu0
        %v1010 = vadd.f32 0.0, %v1009
        %1011 = vmatprep.mubr.bf16.mxu0 %v524
        %1012 = vmatmul.mubr.bf16.gmra.mxu0 %v523
        %v1013 = vpop.f32.mrf.mxu0
        %v1014 = vadd.f32 0.0, %v1013
        %v1015 = vpop.f32.mrf.mxu0
        %v1016 = vadd.f32 0.0, %v1015
        %v1017 = vpop.f32.mrf.mxu0
        %v1018 = vadd.f32 0.0, %v1017
        %v1019 = vpop.f32.mrf.mxu0
        %v1020 = vadd.f32 0.0, %v1019
        %1021 = vmatprep.mubr.bf16.mxu0 %v526
        %1022 = vmatmul.mubr.bf16.gmra.mxu0 %v525
        %v1023 = vpop.f32.mrf.mxu0
        %v1024 = vadd.f32 0.0, %v1023
        %v1025 = vpop.f32.mrf.mxu0
        %v1026 = vadd.f32 0.0, %v1025
        %v1027 = vpop.f32.mrf.mxu0
        %v1028 = vadd.f32 0.0, %v1027
        %v1029 = vpop.f32.mrf.mxu0
        %v1030 = vadd.f32 0.0, %v1029
        %1031 = vmatprep.mubr.bf16.mxu0 %v528
        %1032 = vmatmul.mubr.bf16.gmra.mxu0 %v527
        %v1033 = vpop.f32.mrf.mxu0
        %v1034 = vadd.f32 0.0, %v1033
        %v1035 = vpop.f32.mrf.mxu0
        %v1036 = vadd.f32 0.0, %v1035
        %v1037 = vpop.f32.mrf.mxu0
        %v1038 = vadd.f32 0.0, %v1037
        %v1039 = vpop.f32.mrf.mxu0
        %v1040 = vadd.f32 0.0, %v1039
        %1041 = vmatprep.mubr.bf16.mxu0 %v530
        %1042 = vmatmul.mubr.bf16.gmra.mxu0 %v529
        %v1043 = vpop.f32.mrf.mxu0
        %v1044 = vadd.f32 0.0, %v1043
        %v1045 = vpop.f32.mrf.mxu0
        %v1046 = vadd.f32 0.0, %v1045
        %v1047 = vpop.f32.mrf.mxu0
        %v1048 = vadd.f32 0.0, %v1047
        %v1049 = vpop.f32.mrf.mxu0
        %v1050 = vadd.f32 0.0, %v1049
        %1051 = vmatprep.mubr.bf16.mxu0 %v532
        %1052 = vmatmul.mubr.bf16.gmra.mxu0 %v531
        %v1053 = vpop.f32.mrf.mxu0
        %v1054 = vadd.f32 0.0, %v1053
        %v1055 = vpop.f32.mrf.mxu0
        %v1056 = vadd.f32 0.0, %v1055
        %v1057 = vpop.f32.mrf.mxu0
        %v1058 = vadd.f32 0.0, %v1057
        %v1059 = vpop.f32.mrf.mxu0
        %v1060 = vadd.f32 0.0, %v1059
        %1061 = vmatprep.mubr.bf16.mxu0 %v534
        %1062 = vmatmul.mubr.bf16.gmra.mxu0 %v533
        %v1063 = vpop.f32.mrf.mxu0
        %v1064 = vadd.f32 0.0, %v1063
        %v1065 = vpop.f32.mrf.mxu0
        %v1066 = vadd.f32 0.0, %v1065
        %v1067 = vpop.f32.mrf.mxu0
        %v1068 = vadd.f32 0.0, %v1067
        %v1069 = vpop.f32.mrf.mxu0
        %v1070 = vadd.f32 0.0, %v1069
        %1071 = vmatprep.mubr.bf16.mxu0 %v536
        %1072 = vmatmul.mubr.bf16.gmra.mxu0 %v535
        %v1073 = vpop.f32.mrf.mxu0
        %v1074 = vadd.f32 0.0, %v1073
        %v1075 = vpop.f32.mrf.mxu0
        %v1076 = vadd.f32 0.0, %v1075
        %v1077 = vpop.f32.mrf.mxu0
        %v1078 = vadd.f32 0.0, %v1077
        %v1079 = vpop.f32.mrf.mxu0
        %v1080 = vadd.f32 0.0, %v1079
        %1081 = vdwg.mxu0
        %1082 = vmatprep.subr.bf16.mxu0 %v792
        %1083 = vmatpush1.bf16.msra.mxu0 %v791
        %1084 = vmatprep.subr.bf16.mxu0 %v788
        %1085 = vmatpush1.bf16.msra.mxu0 %v787
        %1086 = vmatprep.subr.bf16.mxu0 %v784
        %1087 = vmatpush1.bf16.msra.mxu0 %v783
        %1088 = vmatprep.subr.bf16.mxu0 %v780
        %1089 = vmatpush1.bf16.msra.mxu0 %v779
        %1090 = vmatprep.subr.bf16.mxu0 %v776
        %1091 = vmatpush1.bf16.msra.mxu0 %v775
        %1092 = vmatprep.subr.bf16.mxu0 %v772
        %1093 = vmatpush1.bf16.msra.mxu0 %v771
        %1094 = vmatprep.subr.bf16.mxu0 %v768
        %1095 = vmatpush1.bf16.msra.mxu0 %v767
        %1096 = vmatprep.subr.bf16.mxu0 %v764
        %1097 = vmatpush1.bf16.msra.mxu0 %v763
        %1098 = vmatprep.subr.bf16.mxu0 %v824
        %1099 = vmatpush2.bf16.msra.mxu0 %v823
        %1100 = vmatprep.subr.bf16.mxu0 %v820
        %1101 = vmatpush2.bf16.msra.mxu0 %v819
        %1102 = vmatprep.subr.bf16.mxu0 %v816
        %1103 = vmatpush2.bf16.msra.mxu0 %v815
        %1104 = vmatprep.subr.bf16.mxu0 %v812
        %1105 = vmatpush2.bf16.msra.mxu0 %v811
        %1106 = vmatprep.subr.bf16.mxu0 %v808
        %1107 = vmatpush2.bf16.msra.mxu0 %v807
        %1108 = vmatprep.subr.bf16.mxu0 %v804
        %1109 = vmatpush2.bf16.msra.mxu0 %v803
        %1110 = vmatprep.subr.bf16.mxu0 %v800
        %1111 = vmatpush2.bf16.msra.mxu0 %v799
        %1112 = vmatprep.subr.bf16.mxu0 %v796
        %1113 = vmatpush2.bf16.msra.mxu0 %v795
        %1114 = vmatprep.mubr.bf16.mxu0 %v506
        %1115 = vmatmul.mubr.bf16.gmra.mxu0 %v505
        %v1116 = vpop.f32.mrf.mxu0
        %v1117 = vadd.f32 0.0, %v1116
        %v1118 = vpop.f32.mrf.mxu0
        %v1119 = vadd.f32 0.0, %v1118
        %v1120 = vpop.f32.mrf.mxu0
        %v1121 = vadd.f32 0.0, %v1120
        %v1122 = vpop.f32.mrf.mxu0
        %v1123 = vadd.f32 0.0, %v1122
        %1124 = vmatprep.mubr.bf16.mxu0 %v508
        %1125 = vmatmul.mubr.bf16.gmra.mxu0 %v507
        %v1126 = vpop.f32.mrf.mxu0
        %v1127 = vadd.f32 0.0, %v1126
        %v1128 = vpop.f32.mrf.mxu0
        %v1129 = vadd.f32 0.0, %v1128
        %v1130 = vpop.f32.mrf.mxu0
        %v1131 = vadd.f32 0.0, %v1130
        %v1132 = vpop.f32.mrf.mxu0
        %v1133 = vadd.f32 0.0, %v1132
        %1134 = vmatprep.mubr.bf16.mxu0 %v510
        %1135 = vmatmul.mubr.bf16.gmra.mxu0 %v509
        %v1136 = vpop.f32.mrf.mxu0
        %v1137 = vadd.f32 0.0, %v1136
        %v1138 = vpop.f32.mrf.mxu0
        %v1139 = vadd.f32 0.0, %v1138
        %v1140 = vpop.f32.mrf.mxu0
        %v1141 = vadd.f32 0.0, %v1140
        %v1142 = vpop.f32.mrf.mxu0
        %v1143 = vadd.f32 0.0, %v1142
        %1144 = vmatprep.mubr.bf16.mxu0 %v512
        %1145 = vmatmul.mubr.bf16.gmra.mxu0 %v511
        %v1146 = vpop.f32.mrf.mxu0
        %v1147 = vadd.f32 0.0, %v1146
        %v1148 = vpop.f32.mrf.mxu0
        %v1149 = vadd.f32 0.0, %v1148
        %v1150 = vpop.f32.mrf.mxu0
        %v1151 = vadd.f32 0.0, %v1150
        %v1152 = vpop.f32.mrf.mxu0
        %v1153 = vadd.f32 0.0, %v1152
        %1154 = vmatprep.mubr.bf16.mxu0 %v514
        %1155 = vmatmul.mubr.bf16.gmra.mxu0 %v513
        %v1156 = vpop.f32.mrf.mxu0
        %v1157 = vadd.f32 0.0, %v1156
        %v1158 = vpop.f32.mrf.mxu0
        %v1159 = vadd.f32 0.0, %v1158
        %v1160 = vpop.f32.mrf.mxu0
        %v1161 = vadd.f32 0.0, %v1160
        %v1162 = vpop.f32.mrf.mxu0
        %v1163 = vadd.f32 0.0, %v1162
        %1164 = vmatprep.mubr.bf16.mxu0 %v516
        %1165 = vmatmul.mubr.bf16.gmra.mxu0 %v515
        %v1166 = vpop.f32.mrf.mxu0
        %v1167 = vadd.f32 0.0, %v1166
        %v1168 = vpop.f32.mrf.mxu0
        %v1169 = vadd.f32 0.0, %v1168
        %v1170 = vpop.f32.mrf.mxu0
        %v1171 = vadd.f32 0.0, %v1170
        %v1172 = vpop.f32.mrf.mxu0
        %v1173 = vadd.f32 0.0, %v1172
        %1174 = vmatprep.mubr.bf16.mxu0 %v518
        %1175 = vmatmul.mubr.bf16.gmra.mxu0 %v517
        %v1176 = vpop.f32.mrf.mxu0
        %v1177 = vadd.f32 0.0, %v1176
        %v1178 = vpop.f32.mrf.mxu0
        %v1179 = vadd.f32 0.0, %v1178
        %v1180 = vpop.f32.mrf.mxu0
        %v1181 = vadd.f32 0.0, %v1180
        %v1182 = vpop.f32.mrf.mxu0
        %v1183 = vadd.f32 0.0, %v1182
        %1184 = vmatprep.mubr.bf16.mxu0 %v520
        %1185 = vmatmul.mubr.bf16.gmra.mxu0 %v519
        %v1186 = vpop.f32.mrf.mxu0
        %v1187 = vadd.f32 0.0, %v1186
        %v1188 = vpop.f32.mrf.mxu0
        %v1189 = vadd.f32 0.0, %v1188
        %v1190 = vpop.f32.mrf.mxu0
        %v1191 = vadd.f32 0.0, %v1190
        %v1192 = vpop.f32.mrf.mxu0
        %v1193 = vadd.f32 0.0, %v1192
        %1194 = vmatprep.mubr.bf16.mxu0 %v522
        %1195 = vmatmul.mubr.bf16.gmra.mxu0 %v521
        %v1196 = vpop.f32.mrf.mxu0
        %v1197 = vadd.f32 0.0, %v1196
        %v1198 = vpop.f32.mrf.mxu0
        %v1199 = vadd.f32 0.0, %v1198
        %v1200 = vpop.f32.mrf.mxu0
        %v1201 = vadd.f32 0.0, %v1200
        %v1202 = vpop.f32.mrf.mxu0
        %v1203 = vadd.f32 0.0, %v1202
        %1204 = vmatprep.mubr.bf16.mxu0 %v524
        %1205 = vmatmul.mubr.bf16.gmra.mxu0 %v523
        %v1206 = vpop.f32.mrf.mxu0
        %v1207 = vadd.f32 0.0, %v1206
        %v1208 = vpop.f32.mrf.mxu0
        %v1209 = vadd.f32 0.0, %v1208
        %v1210 = vpop.f32.mrf.mxu0
        %v1211 = vadd.f32 0.0, %v1210
        %v1212 = vpop.f32.mrf.mxu0
        %v1213 = vadd.f32 0.0, %v1212
        %1214 = vmatprep.mubr.bf16.mxu0 %v526
        %1215 = vmatmul.mubr.bf16.gmra.mxu0 %v525
        %v1216 = vpop.f32.mrf.mxu0
        %v1217 = vadd.f32 0.0, %v1216
        %v1218 = vpop.f32.mrf.mxu0
        %v1219 = vadd.f32 0.0, %v1218
        %v1220 = vpop.f32.mrf.mxu0
        %v1221 = vadd.f32 0.0, %v1220
        %v1222 = vpop.f32.mrf.mxu0
        %v1223 = vadd.f32 0.0, %v1222
        %1224 = vmatprep.mubr.bf16.mxu0 %v528
        %1225 = vmatmul.mubr.bf16.gmra.mxu0 %v527
        %v1226 = vpop.f32.mrf.mxu0
        %v1227 = vadd.f32 0.0, %v1226
        %v1228 = vpop.f32.mrf.mxu0
        %v1229 = vadd.f32 0.0, %v1228
        %v1230 = vpop.f32.mrf.mxu0
        %v1231 = vadd.f32 0.0, %v1230
        %v1232 = vpop.f32.mrf.mxu0
        %v1233 = vadd.f32 0.0, %v1232
        %1234 = vmatprep.mubr.bf16.mxu0 %v530
        %1235 = vmatmul.mubr.bf16.gmra.mxu0 %v529
        %v1236 = vpop.f32.mrf.mxu0
        %v1237 = vadd.f32 0.0, %v1236
        %v1238 = vpop.f32.mrf.mxu0
        %v1239 = vadd.f32 0.0, %v1238
        %v1240 = vpop.f32.mrf.mxu0
        %v1241 = vadd.f32 0.0, %v1240
        %v1242 = vpop.f32.mrf.mxu0
        %v1243 = vadd.f32 0.0, %v1242
        %1244 = vmatprep.mubr.bf16.mxu0 %v532
        %1245 = vmatmul.mubr.bf16.gmra.mxu0 %v531
        %v1246 = vpop.f32.mrf.mxu0
        %v1247 = vadd.f32 0.0, %v1246
        %v1248 = vpop.f32.mrf.mxu0
        %v1249 = vadd.f32 0.0, %v1248
        %v1250 = vpop.f32.mrf.mxu0
        %v1251 = vadd.f32 0.0, %v1250
        %v1252 = vpop.f32.mrf.mxu0
        %v1253 = vadd.f32 0.0, %v1252
        %1254 = vmatprep.mubr.bf16.mxu0 %v534
        %1255 = vmatmul.mubr.bf16.gmra.mxu0 %v533
        %v1256 = vpop.f32.mrf.mxu0
        %v1257 = vadd.f32 0.0, %v1256
        %v1258 = vpop.f32.mrf.mxu0
        %v1259 = vadd.f32 0.0, %v1258
        %v1260 = vpop.f32.mrf.mxu0
        %v1261 = vadd.f32 0.0, %v1260
        %v1262 = vpop.f32.mrf.mxu0
        %v1263 = vadd.f32 0.0, %v1262
        %1264 = vmatprep.mubr.bf16.mxu0 %v536
        %1265 = vmatmul.mubr.bf16.gmra.mxu0 %v535
        %v1266 = vpop.f32.mrf.mxu0
        %v1267 = vadd.f32 0.0, %v1266
        %v1268 = vpop.f32.mrf.mxu0
        %v1269 = vadd.f32 0.0, %v1268
        %v1270 = vpop.f32.mrf.mxu0
        %v1271 = vadd.f32 0.0, %v1270
        %v1272 = vpop.f32.mrf.mxu0
        %v1273 = vadd.f32 0.0, %v1272
        %1274 = vdwg.mxu0
        %v1275 = vxor.u32 %v924, 2147483648
        %v1276 = vxor.u32 %v926, 2147483648
        %v1277 = vxor.u32 %v928, 2147483648
        %v1278 = vxor.u32 %v930, 2147483648
        %v1279 = vxor.u32 %v934, 2147483648
        %v1280 = vxor.u32 %v936, 2147483648
        %v1281 = vxor.u32 %v938, 2147483648
        %v1282 = vxor.u32 %v940, 2147483648
        %v1283 = vxor.u32 %v944, 2147483648
        %v1284 = vxor.u32 %v946, 2147483648
        %v1285 = vxor.u32 %v948, 2147483648
        %v1286 = vxor.u32 %v950, 2147483648
        %v1287 = vxor.u32 %v954, 2147483648
        %v1288 = vxor.u32 %v956, 2147483648
        %v1289 = vxor.u32 %v958, 2147483648
        %v1290 = vxor.u32 %v960, 2147483648
        %v1291 = vxor.u32 %v964, 2147483648
        %v1292 = vxor.u32 %v966, 2147483648
        %v1293 = vxor.u32 %v968, 2147483648
        %v1294 = vxor.u32 %v970, 2147483648
        %v1295 = vxor.u32 %v974, 2147483648
        %v1296 = vxor.u32 %v976, 2147483648
        %v1297 = vxor.u32 %v978, 2147483648
        %v1298 = vxor.u32 %v980, 2147483648
        %v1299 = vxor.u32 %v984, 2147483648
        %v1300 = vxor.u32 %v986, 2147483648
        %v1301 = vxor.u32 %v988, 2147483648
        %v1302 = vxor.u32 %v990, 2147483648
        %v1303 = vxor.u32 %v994, 2147483648
        %v1304 = vxor.u32 %v996, 2147483648
        %v1305 = vxor.u32 %v998, 2147483648
        %v1306 = vxor.u32 %v1000, 2147483648
        %v1307 = vxor.u32 %v1004, 2147483648
        %v1308 = vxor.u32 %v1006, 2147483648
        %v1309 = vxor.u32 %v1008, 2147483648
        %v1310 = vxor.u32 %v1010, 2147483648
        %v1311 = vxor.u32 %v1014, 2147483648
        %v1312 = vxor.u32 %v1016, 2147483648
        %v1313 = vxor.u32 %v1018, 2147483648
        %v1314 = vxor.u32 %v1020, 2147483648
        %v1315 = vxor.u32 %v1024, 2147483648
        %v1316 = vxor.u32 %v1026, 2147483648
        %v1317 = vxor.u32 %v1028, 2147483648
        %v1318 = vxor.u32 %v1030, 2147483648
        %v1319 = vxor.u32 %v1034, 2147483648
        %v1320 = vxor.u32 %v1036, 2147483648
        %v1321 = vxor.u32 %v1038, 2147483648
        %v1322 = vxor.u32 %v1040, 2147483648
        %v1323 = vxor.u32 %v1044, 2147483648
        %v1324 = vxor.u32 %v1046, 2147483648
        %v1325 = vxor.u32 %v1048, 2147483648
        %v1326 = vxor.u32 %v1050, 2147483648
        %v1327 = vxor.u32 %v1054, 2147483648
        %v1328 = vxor.u32 %v1056, 2147483648
        %v1329 = vxor.u32 %v1058, 2147483648
        %v1330 = vxor.u32 %v1060, 2147483648
        %v1331 = vxor.u32 %v1064, 2147483648
        %v1332 = vxor.u32 %v1066, 2147483648
        %v1333 = vxor.u32 %v1068, 2147483648
        %v1334 = vxor.u32 %v1070, 2147483648
        %v1335 = vxor.u32 %v1074, 2147483648
        %v1336 = vxor.u32 %v1076, 2147483648
        %v1337 = vxor.u32 %v1078, 2147483648
        %v1338 = vxor.u32 %v1080, 2147483648
        %v1339 = vmul.f32 %v1275, 1.442695
        %v1340 = vpow.pop %v1339
        %v1341 = vmul.f32 %v1276, 1.442695
        %v1342 = vpow.pop %v1341
        %v1343 = vmul.f32 %v1277, 1.442695
        %v1344 = vpow.pop %v1343
        %v1345 = vmul.f32 %v1278, 1.442695
        %v1346 = vpow.pop %v1345
        %v1347 = vmul.f32 %v1279, 1.442695
        %v1348 = vpow.pop %v1347
        %v1349 = vmul.f32 %v1280, 1.442695
        %v1350 = vpow.pop %v1349
        %v1351 = vmul.f32 %v1281, 1.442695
        %v1352 = vpow.pop %v1351
        %v1353 = vmul.f32 %v1282, 1.442695
        %v1354 = vpow.pop %v1353
        %v1355 = vmul.f32 %v1283, 1.442695
        %v1356 = vpow.pop %v1355
        %v1357 = vmul.f32 %v1284, 1.442695
        %v1358 = vpow.pop %v1357
        %v1359 = vmul.f32 %v1285, 1.442695
        %v1360 = vpow.pop %v1359
        %v1361 = vmul.f32 %v1286, 1.442695
        %v1362 = vpow.pop %v1361
        %v1363 = vmul.f32 %v1287, 1.442695
        %v1364 = vpow.pop %v1363
        %v1365 = vmul.f32 %v1288, 1.442695
        %v1366 = vpow.pop %v1365
        %v1367 = vmul.f32 %v1289, 1.442695
        %v1368 = vpow.pop %v1367
        %v1369 = vmul.f32 %v1290, 1.442695
        %v1370 = vpow.pop %v1369
        %v1371 = vmul.f32 %v1291, 1.442695
        %v1372 = vpow.pop %v1371
        %v1373 = vmul.f32 %v1292, 1.442695
        %v1374 = vpow.pop %v1373
        %v1375 = vmul.f32 %v1293, 1.442695
        %v1376 = vpow.pop %v1375
        %v1377 = vmul.f32 %v1294, 1.442695
        %v1378 = vpow.pop %v1377
        %v1379 = vmul.f32 %v1295, 1.442695
        %v1380 = vpow.pop %v1379
        %v1381 = vmul.f32 %v1296, 1.442695
        %v1382 = vpow.pop %v1381
        %v1383 = vmul.f32 %v1297, 1.442695
        %v1384 = vpow.pop %v1383
        %v1385 = vmul.f32 %v1298, 1.442695
        %v1386 = vpow.pop %v1385
        %v1387 = vmul.f32 %v1299, 1.442695
        %v1388 = vpow.pop %v1387
        %v1389 = vmul.f32 %v1300, 1.442695
        %v1390 = vpow.pop %v1389
        %v1391 = vmul.f32 %v1301, 1.442695
        %v1392 = vpow.pop %v1391
        %v1393 = vmul.f32 %v1302, 1.442695
        %v1394 = vpow.pop %v1393
        %v1395 = vmul.f32 %v1303, 1.442695
        %v1396 = vpow.pop %v1395
        %v1397 = vmul.f32 %v1304, 1.442695
        %v1398 = vpow.pop %v1397
        %v1399 = vmul.f32 %v1305, 1.442695
        %v1400 = vpow.pop %v1399
        %v1401 = vmul.f32 %v1306, 1.442695
        %v1402 = vpow.pop %v1401
        %v1403 = vmul.f32 %v1307, 1.442695
        %v1404 = vpow.pop %v1403
        %v1405 = vmul.f32 %v1308, 1.442695
        %v1406 = vpow.pop %v1405
        %v1407 = vmul.f32 %v1309, 1.442695
        %v1408 = vpow.pop %v1407
        %v1409 = vmul.f32 %v1310, 1.442695
        %v1410 = vpow.pop %v1409
        %v1411 = vmul.f32 %v1311, 1.442695
        %v1412 = vpow.pop %v1411
        %v1413 = vmul.f32 %v1312, 1.442695
        %v1414 = vpow.pop %v1413
        %v1415 = vmul.f32 %v1313, 1.442695
        %v1416 = vpow.pop %v1415
        %v1417 = vmul.f32 %v1314, 1.442695
        %v1418 = vpow.pop %v1417
        %v1419 = vmul.f32 %v1315, 1.442695
        %v1420 = vpow.pop %v1419
        %v1421 = vmul.f32 %v1316, 1.442695
        %v1422 = vpow.pop %v1421
        %v1423 = vmul.f32 %v1317, 1.442695
        %v1424 = vpow.pop %v1423
        %v1425 = vmul.f32 %v1318, 1.442695
        %v1426 = vpow.pop %v1425
        %v1427 = vmul.f32 %v1319, 1.442695
        %v1428 = vpow.pop %v1427
        %v1429 = vmul.f32 %v1320, 1.442695
        %v1430 = vpow.pop %v1429
        %v1431 = vmul.f32 %v1321, 1.442695
        %v1432 = vpow.pop %v1431
        %v1433 = vmul.f32 %v1322, 1.442695
        %v1434 = vpow.pop %v1433
        %v1435 = vmul.f32 %v1323, 1.442695
        %v1436 = vpow.pop %v1435
        %v1437 = vmul.f32 %v1324, 1.442695
        %v1438 = vpow.pop %v1437
        %v1439 = vmul.f32 %v1325, 1.442695
        %v1440 = vpow.pop %v1439
        %v1441 = vmul.f32 %v1326, 1.442695
        %v1442 = vpow.pop %v1441
        %v1443 = vmul.f32 %v1327, 1.442695
        %v1444 = vpow.pop %v1443
        %v1445 = vmul.f32 %v1328, 1.442695
        %v1446 = vpow.pop %v1445
        %v1447 = vmul.f32 %v1329, 1.442695
        %v1448 = vpow.pop %v1447
        %v1449 = vmul.f32 %v1330, 1.442695
        %v1450 = vpow.pop %v1449
        %v1451 = vmul.f32 %v1331, 1.442695
        %v1452 = vpow.pop %v1451
        %v1453 = vmul.f32 %v1332, 1.442695
        %v1454 = vpow.pop %v1453
        %v1455 = vmul.f32 %v1333, 1.442695
        %v1456 = vpow.pop %v1455
        %v1457 = vmul.f32 %v1334, 1.442695
        %v1458 = vpow.pop %v1457
        %v1459 = vmul.f32 %v1335, 1.442695
        %v1460 = vpow.pop %v1459
        %v1461 = vmul.f32 %v1336, 1.442695
        %v1462 = vpow.pop %v1461
        %v1463 = vmul.f32 %v1337, 1.442695
        %v1464 = vpow.pop %v1463
        %v1465 = vmul.f32 %v1338, 1.442695
        %v1466 = vpow.pop %v1465
        %v1467 = vadd.f32 %v1340, 1.0
        %v1468 = vadd.f32 %v1342, 1.0
        %v1469 = vadd.f32 %v1344, 1.0
        %v1470 = vadd.f32 %v1346, 1.0
        %v1471 = vadd.f32 %v1348, 1.0
        %v1472 = vadd.f32 %v1350, 1.0
        %v1473 = vadd.f32 %v1352, 1.0
        %v1474 = vadd.f32 %v1354, 1.0
        %v1475 = vadd.f32 %v1356, 1.0
        %v1476 = vadd.f32 %v1358, 1.0
        %v1477 = vadd.f32 %v1360, 1.0
        %v1478 = vadd.f32 %v1362, 1.0
        %v1479 = vadd.f32 %v1364, 1.0
        %v1480 = vadd.f32 %v1366, 1.0
        %v1481 = vadd.f32 %v1368, 1.0
        %v1482 = vadd.f32 %v1370, 1.0
        %v1483 = vadd.f32 %v1372, 1.0
        %v1484 = vadd.f32 %v1374, 1.0
        %v1485 = vadd.f32 %v1376, 1.0
        %v1486 = vadd.f32 %v1378, 1.0
        %v1487 = vadd.f32 %v1380, 1.0
        %v1488 = vadd.f32 %v1382, 1.0
        %v1489 = vadd.f32 %v1384, 1.0
        %v1490 = vadd.f32 %v1386, 1.0
        %v1491 = vadd.f32 %v1388, 1.0
        %v1492 = vadd.f32 %v1390, 1.0
        %v1493 = vadd.f32 %v1392, 1.0
        %v1494 = vadd.f32 %v1394, 1.0
        %v1495 = vadd.f32 %v1396, 1.0
        %v1496 = vadd.f32 %v1398, 1.0
        %v1497 = vadd.f32 %v1400, 1.0
        %v1498 = vadd.f32 %v1402, 1.0
        %v1499 = vadd.f32 %v1404, 1.0
        %v1500 = vadd.f32 %v1406, 1.0
        %v1501 = vadd.f32 %v1408, 1.0
        %v1502 = vadd.f32 %v1410, 1.0
        %v1503 = vadd.f32 %v1412, 1.0
        %v1504 = vadd.f32 %v1414, 1.0
        %v1505 = vadd.f32 %v1416, 1.0
        %v1506 = vadd.f32 %v1418, 1.0
        %v1507 = vadd.f32 %v1420, 1.0
        %v1508 = vadd.f32 %v1422, 1.0
        %v1509 = vadd.f32 %v1424, 1.0
        %v1510 = vadd.f32 %v1426, 1.0
        %v1511 = vadd.f32 %v1428, 1.0
        %v1512 = vadd.f32 %v1430, 1.0
        %v1513 = vadd.f32 %v1432, 1.0
        %v1514 = vadd.f32 %v1434, 1.0
        %v1515 = vadd.f32 %v1436, 1.0
        %v1516 = vadd.f32 %v1438, 1.0
        %v1517 = vadd.f32 %v1440, 1.0
        %v1518 = vadd.f32 %v1442, 1.0
        %v1519 = vadd.f32 %v1444, 1.0
        %v1520 = vadd.f32 %v1446, 1.0
        %v1521 = vadd.f32 %v1448, 1.0
        %v1522 = vadd.f32 %v1450, 1.0
        %v1523 = vadd.f32 %v1452, 1.0
        %v1524 = vadd.f32 %v1454, 1.0
        %v1525 = vadd.f32 %v1456, 1.0
        %v1526 = vadd.f32 %v1458, 1.0
        %v1527 = vadd.f32 %v1460, 1.0
        %v1528 = vadd.f32 %v1462, 1.0
        %v1529 = vadd.f32 %v1464, 1.0
        %v1530 = vadd.f32 %v1466, 1.0
        %v1531 = vrcp.pop %v1467
        %v1532 = vmul.f32 1.0, %v1531
        %v1533 = vrcp.pop %v1468
        %v1534 = vmul.f32 1.0, %v1533
        %v1535 = vrcp.pop %v1469
        %v1536 = vmul.f32 1.0, %v1535
        %v1537 = vrcp.pop %v1470
        %v1538 = vmul.f32 1.0, %v1537
        %v1539 = vrcp.pop %v1471
        %v1540 = vmul.f32 1.0, %v1539
        %v1541 = vrcp.pop %v1472
        %v1542 = vmul.f32 1.0, %v1541
        %v1543 = vrcp.pop %v1473
        %v1544 = vmul.f32 1.0, %v1543
        %v1545 = vrcp.pop %v1474
        %v1546 = vmul.f32 1.0, %v1545
        %v1547 = vrcp.pop %v1475
        %v1548 = vmul.f32 1.0, %v1547
        %v1549 = vrcp.pop %v1476
        %v1550 = vmul.f32 1.0, %v1549
        %v1551 = vrcp.pop %v1477
        %v1552 = vmul.f32 1.0, %v1551
        %v1553 = vrcp.pop %v1478
        %v1554 = vmul.f32 1.0, %v1553
        %v1555 = vrcp.pop %v1479
        %v1556 = vmul.f32 1.0, %v1555
        %v1557 = vrcp.pop %v1480
        %v1558 = vmul.f32 1.0, %v1557
        %v1559 = vrcp.pop %v1481
        %v1560 = vmul.f32 1.0, %v1559
        %v1561 = vrcp.pop %v1482
        %v1562 = vmul.f32 1.0, %v1561
        %v1563 = vrcp.pop %v1483
        %v1564 = vmul.f32 1.0, %v1563
        %v1565 = vrcp.pop %v1484
        %v1566 = vmul.f32 1.0, %v1565
        %v1567 = vrcp.pop %v1485
        %v1568 = vmul.f32 1.0, %v1567
        %v1569 = vrcp.pop %v1486
        %v1570 = vmul.f32 1.0, %v1569
        %v1571 = vrcp.pop %v1487
        %v1572 = vmul.f32 1.0, %v1571
        %v1573 = vrcp.pop %v1488
        %v1574 = vmul.f32 1.0, %v1573
        %v1575 = vrcp.pop %v1489
        %v1576 = vmul.f32 1.0, %v1575
        %v1577 = vrcp.pop %v1490
        %v1578 = vmul.f32 1.0, %v1577
        %v1579 = vrcp.pop %v1491
        %v1580 = vmul.f32 1.0, %v1579
        %v1581 = vrcp.pop %v1492
        %v1582 = vmul.f32 1.0, %v1581
        %v1583 = vrcp.pop %v1493
        %v1584 = vmul.f32 1.0, %v1583
        %v1585 = vrcp.pop %v1494
        %v1586 = vmul.f32 1.0, %v1585
        %v1587 = vrcp.pop %v1495
        %v1588 = vmul.f32 1.0, %v1587
        %v1589 = vrcp.pop %v1496
        %v1590 = vmul.f32 1.0, %v1589
        %v1591 = vrcp.pop %v1497
        %v1592 = vmul.f32 1.0, %v1591
        %v1593 = vrcp.pop %v1498
        %v1594 = vmul.f32 1.0, %v1593
        %v1595 = vrcp.pop %v1499
        %v1596 = vmul.f32 1.0, %v1595
        %v1597 = vrcp.pop %v1500
        %v1598 = vmul.f32 1.0, %v1597
        %v1599 = vrcp.pop %v1501
        %v1600 = vmul.f32 1.0, %v1599
        %v1601 = vrcp.pop %v1502
        %v1602 = vmul.f32 1.0, %v1601
        %v1603 = vrcp.pop %v1503
        %v1604 = vmul.f32 1.0, %v1603
        %v1605 = vrcp.pop %v1504
        %v1606 = vmul.f32 1.0, %v1605
        %v1607 = vrcp.pop %v1505
        %v1608 = vmul.f32 1.0, %v1607
        %v1609 = vrcp.pop %v1506
        %v1610 = vmul.f32 1.0, %v1609
        %v1611 = vrcp.pop %v1507
        %v1612 = vmul.f32 1.0, %v1611
        %v1613 = vrcp.pop %v1508
        %v1614 = vmul.f32 1.0, %v1613
        %v1615 = vrcp.pop %v1509
        %v1616 = vmul.f32 1.0, %v1615
        %v1617 = vrcp.pop %v1510
        %v1618 = vmul.f32 1.0, %v1617
        %v1619 = vrcp.pop %v1511
        %v1620 = vmul.f32 1.0, %v1619
        %v1621 = vrcp.pop %v1512
        %v1622 = vmul.f32 1.0, %v1621
        %v1623 = vrcp.pop %v1513
        %v1624 = vmul.f32 1.0, %v1623
        %v1625 = vrcp.pop %v1514
        %v1626 = vmul.f32 1.0, %v1625
        %v1627 = vrcp.pop %v1515
        %v1628 = vmul.f32 1.0, %v1627
        %v1629 = vrcp.pop %v1516
        %v1630 = vmul.f32 1.0, %v1629
        %v1631 = vrcp.pop %v1517
        %v1632 = vmul.f32 1.0, %v1631
        %v1633 = vrcp.pop %v1518
        %v1634 = vmul.f32 1.0, %v1633
        %v1635 = vrcp.pop %v1519
        %v1636 = vmul.f32 1.0, %v1635
        %v1637 = vrcp.pop %v1520
        %v1638 = vmul.f32 1.0, %v1637
        %v1639 = vrcp.pop %v1521
        %v1640 = vmul.f32 1.0, %v1639
        %v1641 = vrcp.pop %v1522
        %v1642 = vmul.f32 1.0, %v1641
        %v1643 = vrcp.pop %v1523
        %v1644 = vmul.f32 1.0, %v1643
        %v1645 = vrcp.pop %v1524
        %v1646 = vmul.f32 1.0, %v1645
        %v1647 = vrcp.pop %v1525
        %v1648 = vmul.f32 1.0, %v1647
        %v1649 = vrcp.pop %v1526
        %v1650 = vmul.f32 1.0, %v1649
        %v1651 = vrcp.pop %v1527
        %v1652 = vmul.f32 1.0, %v1651
        %v1653 = vrcp.pop %v1528
        %v1654 = vmul.f32 1.0, %v1653
        %v1655 = vrcp.pop %v1529
        %v1656 = vmul.f32 1.0, %v1655
        %v1657 = vrcp.pop %v1530
        %v1658 = vmul.f32 1.0, %v1657
        %v1659 = vmul.f32 %v924, %v1532
        %v1660 = vmul.f32 %v926, %v1534
        %v1661 = vmul.f32 %v928, %v1536
        %v1662 = vmul.f32 %v930, %v1538
        %v1663 = vmul.f32 %v934, %v1540
        %v1664 = vmul.f32 %v936, %v1542
        %v1665 = vmul.f32 %v938, %v1544
        %v1666 = vmul.f32 %v940, %v1546
        %v1667 = vmul.f32 %v944, %v1548
        %v1668 = vmul.f32 %v946, %v1550
        %v1669 = vmul.f32 %v948, %v1552
        %v1670 = vmul.f32 %v950, %v1554
        %v1671 = vmul.f32 %v954, %v1556
        %v1672 = vmul.f32 %v956, %v1558
        %v1673 = vmul.f32 %v958, %v1560
        %v1674 = vmul.f32 %v960, %v1562
        %v1675 = vmul.f32 %v964, %v1564
        %v1676 = vmul.f32 %v966, %v1566
        %v1677 = vmul.f32 %v968, %v1568
        %v1678 = vmul.f32 %v970, %v1570
        %v1679 = vmul.f32 %v974, %v1572
        %v1680 = vmul.f32 %v976, %v1574
        %v1681 = vmul.f32 %v978, %v1576
        %v1682 = vmul.f32 %v980, %v1578
        %v1683 = vmul.f32 %v984, %v1580
        %v1684 = vmul.f32 %v986, %v1582
        %v1685 = vmul.f32 %v988, %v1584
        %v1686 = vmul.f32 %v990, %v1586
        %v1687 = vmul.f32 %v994, %v1588
        %v1688 = vmul.f32 %v996, %v1590
        %v1689 = vmul.f32 %v998, %v1592
        %v1690 = vmul.f32 %v1000, %v1594
        %v1691 = vmul.f32 %v1004, %v1596
        %v1692 = vmul.f32 %v1006, %v1598
        %v1693 = vmul.f32 %v1008, %v1600
        %v1694 = vmul.f32 %v1010, %v1602
        %v1695 = vmul.f32 %v1014, %v1604
        %v1696 = vmul.f32 %v1016, %v1606
        %v1697 = vmul.f32 %v1018, %v1608
        %v1698 = vmul.f32 %v1020, %v1610
        %v1699 = vmul.f32 %v1024, %v1612
        %v1700 = vmul.f32 %v1026, %v1614
        %v1701 = vmul.f32 %v1028, %v1616
        %v1702 = vmul.f32 %v1030, %v1618
        %v1703 = vmul.f32 %v1034, %v1620
        %v1704 = vmul.f32 %v1036, %v1622
        %v1705 = vmul.f32 %v1038, %v1624
        %v1706 = vmul.f32 %v1040, %v1626
        %v1707 = vmul.f32 %v1044, %v1628
        %v1708 = vmul.f32 %v1046, %v1630
        %v1709 = vmul.f32 %v1048, %v1632
        %v1710 = vmul.f32 %v1050, %v1634
        %v1711 = vmul.f32 %v1054, %v1636
        %v1712 = vmul.f32 %v1056, %v1638
        %v1713 = vmul.f32 %v1058, %v1640
        %v1714 = vmul.f32 %v1060, %v1642
        %v1715 = vmul.f32 %v1064, %v1644
        %v1716 = vmul.f32 %v1066, %v1646
        %v1717 = vmul.f32 %v1068, %v1648
        %v1718 = vmul.f32 %v1070, %v1650
        %v1719 = vmul.f32 %v1074, %v1652
        %v1720 = vmul.f32 %v1076, %v1654
        %v1721 = vmul.f32 %v1078, %v1656
        %v1722 = vmul.f32 %v1080, %v1658
        %v1723 = vmul.f32 %v1659, %v1117
        %v1724 = vmul.f32 %v1660, %v1119
        %v1725 = vmul.f32 %v1661, %v1121
        %v1726 = vmul.f32 %v1662, %v1123
        %v1727 = vmul.f32 %v1663, %v1127
        %v1728 = vmul.f32 %v1664, %v1129
        %v1729 = vmul.f32 %v1665, %v1131
        %v1730 = vmul.f32 %v1666, %v1133
        %v1731 = vmul.f32 %v1667, %v1137
        %v1732 = vmul.f32 %v1668, %v1139
        %v1733 = vmul.f32 %v1669, %v1141
        %v1734 = vmul.f32 %v1670, %v1143
        %v1735 = vmul.f32 %v1671, %v1147
        %v1736 = vmul.f32 %v1672, %v1149
        %v1737 = vmul.f32 %v1673, %v1151
        %v1738 = vmul.f32 %v1674, %v1153
        %v1739 = vmul.f32 %v1675, %v1157
        %v1740 = vmul.f32 %v1676, %v1159
        %v1741 = vmul.f32 %v1677, %v1161
        %v1742 = vmul.f32 %v1678, %v1163
        %v1743 = vmul.f32 %v1679, %v1167
        %v1744 = vmul.f32 %v1680, %v1169
        %v1745 = vmul.f32 %v1681, %v1171
        %v1746 = vmul.f32 %v1682, %v1173
        %v1747 = vmul.f32 %v1683, %v1177
        %v1748 = vmul.f32 %v1684, %v1179
        %v1749 = vmul.f32 %v1685, %v1181
        %v1750 = vmul.f32 %v1686, %v1183
        %v1751 = vmul.f32 %v1687, %v1187
        %v1752 = vmul.f32 %v1688, %v1189
        %v1753 = vmul.f32 %v1689, %v1191
        %v1754 = vmul.f32 %v1690, %v1193
        %v1755 = vmul.f32 %v1691, %v1197
        %v1756 = vmul.f32 %v1692, %v1199
        %v1757 = vmul.f32 %v1693, %v1201
        %v1758 = vmul.f32 %v1694, %v1203
        %v1759 = vmul.f32 %v1695, %v1207
        %v1760 = vmul.f32 %v1696, %v1209
        %v1761 = vmul.f32 %v1697, %v1211
        %v1762 = vmul.f32 %v1698, %v1213
        %v1763 = vmul.f32 %v1699, %v1217
        %v1764 = vmul.f32 %v1700, %v1219
        %v1765 = vmul.f32 %v1701, %v1221
        %v1766 = vmul.f32 %v1702, %v1223
        %v1767 = vmul.f32 %v1703, %v1227
        %v1768 = vmul.f32 %v1704, %v1229
        %v1769 = vmul.f32 %v1705, %v1231
        %v1770 = vmul.f32 %v1706, %v1233
        %v1771 = vmul.f32 %v1707, %v1237
        %v1772 = vmul.f32 %v1708, %v1239
        %v1773 = vmul.f32 %v1709, %v1241
        %v1774 = vmul.f32 %v1710, %v1243
        %v1775 = vmul.f32 %v1711, %v1247
        %v1776 = vmul.f32 %v1712, %v1249
        %v1777 = vmul.f32 %v1713, %v1251
        %v1778 = vmul.f32 %v1714, %v1253
        %v1779 = vmul.f32 %v1715, %v1257
        %v1780 = vmul.f32 %v1716, %v1259
        %v1781 = vmul.f32 %v1717, %v1261
        %v1782 = vmul.f32 %v1718, %v1263
        %v1783 = vmul.f32 %v1719, %v1267
        %v1784 = vmul.f32 %v1720, %v1269
        %v1785 = vmul.f32 %v1721, %v1271
        %v1786 = vmul.f32 %v1722, %v1273
        %v1787 = vld [vmem:[#allocation2] sm:$0xff]
        %v1788 = vld [vmem:[#allocation2 + $0x8] sm:$0xff]
        %v1789 = vld [vmem:[#allocation2 + $0x10] sm:$0xff]
        %v1790 = vld [vmem:[#allocation2 + $0x18] sm:$0xff]
        %v1791 = vld [vmem:[#allocation2 + $0x20] sm:$0xff]
        %v1792 = vld [vmem:[#allocation2 + $0x28] sm:$0xff]
        %v1793 = vld [vmem:[#allocation2 + $0x30] sm:$0xff]
        %v1794 = vld [vmem:[#allocation2 + $0x38] sm:$0xff]
        %v1795 = vld [vmem:[#allocation2 + $0x40] sm:$0xff]
        %v1796 = vld [vmem:[#allocation2 + $0x48] sm:$0xff]
        %v1797 = vld [vmem:[#allocation2 + $0x50] sm:$0xff]
        %v1798 = vld [vmem:[#allocation2 + $0x58] sm:$0xff]
        %v1799 = vld [vmem:[#allocation2 + $0x60] sm:$0xff]
        %v1800 = vld [vmem:[#allocation2 + $0x68] sm:$0xff]
        %v1801 = vld [vmem:[#allocation2 + $0x70] sm:$0xff]
        %v1802 = vld [vmem:[#allocation2 + $0x78] sm:$0xff]
        %v1803 = vld [vmem:[#allocation2 + $0x80] sm:$0xff]
        %v1804 = vld [vmem:[#allocation2 + $0x88] sm:$0xff]
        %v1805 = vld [vmem:[#allocation2 + $0x90] sm:$0xff]
        %v1806 = vld [vmem:[#allocation2 + $0x98] sm:$0xff]
        %v1807 = vld [vmem:[#allocation2 + $0xa0] sm:$0xff]
        %v1808 = vld [vmem:[#allocation2 + $0xa8] sm:$0xff]
        %v1809 = vld [vmem:[#allocation2 + $0xb0] sm:$0xff]
        %v1810 = vld [vmem:[#allocation2 + $0xb8] sm:$0xff]
        %v1811 = vld [vmem:[#allocation2 + $0xc0] sm:$0xff]
        %v1812 = vld [vmem:[#allocation2 + $0xc8] sm:$0xff]
        %v1813 = vld [vmem:[#allocation2 + $0xd0] sm:$0xff]
        %v1814 = vld [vmem:[#allocation2 + $0xd8] sm:$0xff]
        %v1815 = vld [vmem:[#allocation2 + $0xe0] sm:$0xff]
        %v1816 = vld [vmem:[#allocation2 + $0xe8] sm:$0xff]
        %v1817 = vld [vmem:[#allocation2 + $0xf0] sm:$0xff]
        %v1818 = vld [vmem:[#allocation2 + $0xf8] sm:$0xff]
        %v1819 = vld [vmem:[#allocation2 + $0x100] sm:$0xff]
        %v1820 = vld [vmem:[#allocation2 + $0x108] sm:$0xff]
        %v1821 = vld [vmem:[#allocation2 + $0x110] sm:$0xff]
        %v1822 = vld [vmem:[#allocation2 + $0x118] sm:$0xff]
        %v1823 = vld [vmem:[#allocation2 + $0x120] sm:$0xff]
        %v1824 = vld [vmem:[#allocation2 + $0x128] sm:$0xff]
        %v1825 = vld [vmem:[#allocation2 + $0x130] sm:$0xff]
        %v1826 = vld [vmem:[#allocation2 + $0x138] sm:$0xff]
        %v1827 = vld [vmem:[#allocation2 + $0x140] sm:$0xff]
        %v1828 = vld [vmem:[#allocation2 + $0x148] sm:$0xff]
        %v1829 = vld [vmem:[#allocation2 + $0x150] sm:$0xff]
        %v1830 = vld [vmem:[#allocation2 + $0x158] sm:$0xff]
        %v1831 = vld [vmem:[#allocation2 + $0x160] sm:$0xff]
        %v1832 = vld [vmem:[#allocation2 + $0x168] sm:$0xff]
        %v1833 = vld [vmem:[#allocation2 + $0x170] sm:$0xff]
        %v1834 = vld [vmem:[#allocation2 + $0x178] sm:$0xff]
        %v1835 = vld [vmem:[#allocation2 + $0x180] sm:$0xff]
        %v1836 = vld [vmem:[#allocation2 + $0x188] sm:$0xff]
        %v1837 = vld [vmem:[#allocation2 + $0x190] sm:$0xff]
        %v1838 = vld [vmem:[#allocation2 + $0x198] sm:$0xff]
        %v1839 = vld [vmem:[#allocation2 + $0x1a0] sm:$0xff]
        %v1840 = vld [vmem:[#allocation2 + $0x1a8] sm:$0xff]
        %v1841 = vld [vmem:[#allocation2 + $0x1b0] sm:$0xff]
        %v1842 = vld [vmem:[#allocation2 + $0x1b8] sm:$0xff]
        %v1843 = vld [vmem:[#allocation2 + $0x1c0] sm:$0xff]
        %v1844 = vld [vmem:[#allocation2 + $0x1c8] sm:$0xff]
        %v1845 = vld [vmem:[#allocation2 + $0x1d0] sm:$0xff]
        %v1846 = vld [vmem:[#allocation2 + $0x1d8] sm:$0xff]
        %v1847 = vld [vmem:[#allocation2 + $0x1e0] sm:$0xff]
        %v1848 = vld [vmem:[#allocation2 + $0x1e8] sm:$0xff]
        %v1849 = vld [vmem:[#allocation2 + $0x1f0] sm:$0xff]
        %v1850 = vld [vmem:[#allocation2 + $0x1f8] sm:$0xff]
        %v1851 = vpack.c.bf16 %v1725, %v1723
        %v1852 = vpack.c.bf16 %v1726, %v1724
        %v1853 = vpack.c.bf16 %v1729, %v1727
        %v1854 = vpack.c.bf16 %v1730, %v1728
        %v1855 = vpack.c.bf16 %v1733, %v1731
        %v1856 = vpack.c.bf16 %v1734, %v1732
        %v1857 = vpack.c.bf16 %v1737, %v1735
        %v1858 = vpack.c.bf16 %v1738, %v1736
        %v1859 = vpack.c.bf16 %v1741, %v1739
        %v1860 = vpack.c.bf16 %v1742, %v1740
        %v1861 = vpack.c.bf16 %v1745, %v1743
        %v1862 = vpack.c.bf16 %v1746, %v1744
        %v1863 = vpack.c.bf16 %v1749, %v1747
        %v1864 = vpack.c.bf16 %v1750, %v1748
        %v1865 = vpack.c.bf16 %v1753, %v1751
        %v1866 = vpack.c.bf16 %v1754, %v1752
        %v1867 = vpack.c.bf16 %v1757, %v1755
        %v1868 = vpack.c.bf16 %v1758, %v1756
        %v1869 = vpack.c.bf16 %v1761, %v1759
        %v1870 = vpack.c.bf16 %v1762, %v1760
        %v1871 = vpack.c.bf16 %v1765, %v1763
        %v1872 = vpack.c.bf16 %v1766, %v1764
        %v1873 = vpack.c.bf16 %v1769, %v1767
        %v1874 = vpack.c.bf16 %v1770, %v1768
        %v1875 = vpack.c.bf16 %v1773, %v1771
        %v1876 = vpack.c.bf16 %v1774, %v1772
        %v1877 = vpack.c.bf16 %v1777, %v1775
        %v1878 = vpack.c.bf16 %v1778, %v1776
        %v1879 = vpack.c.bf16 %v1781, %v1779
        %v1880 = vpack.c.bf16 %v1782, %v1780
        %v1881 = vpack.c.bf16 %v1785, %v1783
        %v1882 = vpack.c.bf16 %v1786, %v1784
        %v1883 = vld [vmem:[%s242] sm:$0xff]
        %v1884 = vld [vmem:[%s242 + $0x8] sm:$0xff]
        %v1885 = vld [vmem:[%s242 + $0x10] sm:$0xff]
        %v1886 = vld [vmem:[%s242 + $0x18] sm:$0xff]
        %v1887 = vld [vmem:[%s242 + $0x20] sm:$0xff]
        %v1888 = vld [vmem:[%s242 + $0x28] sm:$0xff]
        %v1889 = vld [vmem:[%s242 + $0x30] sm:$0xff]
        %v1890 = vld [vmem:[%s242 + $0x38] sm:$0xff]
        %v1891 = vld [vmem:[%s242 + $0x40] sm:$0xff]
        %v1892 = vld [vmem:[%s242 + $0x48] sm:$0xff]
        %v1893 = vld [vmem:[%s242 + $0x50] sm:$0xff]
        %v1894 = vld [vmem:[%s242 + $0x58] sm:$0xff]
        %v1895 = vld [vmem:[%s242 + $0x60] sm:$0xff]
        %v1896 = vld [vmem:[%s242 + $0x68] sm:$0xff]
        %v1897 = vld [vmem:[%s242 + $0x70] sm:$0xff]
        %v1898 = vld [vmem:[%s242 + $0x78] sm:$0xff]
        %v1899 = vld [vmem:[%s242 + $0x80] sm:$0xff]
        %v1900 = vld [vmem:[%s242 + $0x88] sm:$0xff]
        %v1901 = vld [vmem:[%s242 + $0x90] sm:$0xff]
        %v1902 = vld [vmem:[%s242 + $0x98] sm:$0xff]
        %v1903 = vld [vmem:[%s242 + $0xa0] sm:$0xff]
        %v1904 = vld [vmem:[%s242 + $0xa8] sm:$0xff]
        %v1905 = vld [vmem:[%s242 + $0xb0] sm:$0xff]
        %v1906 = vld [vmem:[%s242 + $0xb8] sm:$0xff]
        %v1907 = vld [vmem:[%s242 + $0xc0] sm:$0xff]
        %v1908 = vld [vmem:[%s242 + $0xc8] sm:$0xff]
        %v1909 = vld [vmem:[%s242 + $0xd0] sm:$0xff]
        %v1910 = vld [vmem:[%s242 + $0xd8] sm:$0xff]
        %v1911 = vld [vmem:[%s242 + $0xe0] sm:$0xff]
        %v1912 = vld [vmem:[%s242 + $0xe8] sm:$0xff]
        %v1913 = vld [vmem:[%s242 + $0xf0] sm:$0xff]
        %v1914 = vld [vmem:[%s242 + $0xf8] sm:$0xff]
        %v1947 = vunpack.c.l.b16 %v1883
        %v1948 = vunpack.c.h.b16 %v1883
        %v1949 = vunpack.c.l.b16 %v1884
        %v1950 = vunpack.c.h.b16 %v1884
        %v1951 = vunpack.c.l.b16 %v1885
        %v1952 = vunpack.c.h.b16 %v1885
        %v1953 = vunpack.c.l.b16 %v1886
        %v1954 = vunpack.c.h.b16 %v1886
        %v1955 = vunpack.c.l.b16 %v1887
        %v1956 = vunpack.c.h.b16 %v1887
        %v1957 = vunpack.c.l.b16 %v1888
        %v1958 = vunpack.c.h.b16 %v1888
        %v1959 = vunpack.c.l.b16 %v1889
        %v1960 = vunpack.c.h.b16 %v1889
        %v1961 = vunpack.c.l.b16 %v1890
        %v1962 = vunpack.c.h.b16 %v1890
        %v1963 = vunpack.c.l.b16 %v1891
        %v1964 = vunpack.c.h.b16 %v1891
        %v1965 = vunpack.c.l.b16 %v1892
        %v1966 = vunpack.c.h.b16 %v1892
        %v1967 = vunpack.c.l.b16 %v1893
        %v1968 = vunpack.c.h.b16 %v1893
        %v1969 = vunpack.c.l.b16 %v1894
        %v1970 = vunpack.c.h.b16 %v1894
        %v1971 = vunpack.c.l.b16 %v1895
        %v1972 = vunpack.c.h.b16 %v1895
        %v1973 = vunpack.c.l.b16 %v1896
        %v1974 = vunpack.c.h.b16 %v1896
        %v1975 = vunpack.c.l.b16 %v1897
        %v1976 = vunpack.c.h.b16 %v1897
        %v1977 = vunpack.c.l.b16 %v1898
        %v1978 = vunpack.c.h.b16 %v1898
        %v1979 = vunpack.c.l.b16 %v1899
        %v1980 = vunpack.c.h.b16 %v1899
        %v1981 = vunpack.c.l.b16 %v1900
        %v1982 = vunpack.c.h.b16 %v1900
        %v1983 = vunpack.c.l.b16 %v1901
        %v1984 = vunpack.c.h.b16 %v1901
        %v1985 = vunpack.c.l.b16 %v1902
        %v1986 = vunpack.c.h.b16 %v1902
        %v1987 = vunpack.c.l.b16 %v1903
        %v1988 = vunpack.c.h.b16 %v1903
        %v1989 = vunpack.c.l.b16 %v1904
        %v1990 = vunpack.c.h.b16 %v1904
        %v1991 = vunpack.c.l.b16 %v1905
        %v1992 = vunpack.c.h.b16 %v1905
        %v1993 = vunpack.c.l.b16 %v1906
        %v1994 = vunpack.c.h.b16 %v1906
        %v1995 = vunpack.c.l.b16 %v1907
        %v1996 = vunpack.c.h.b16 %v1907
        %v1997 = vunpack.c.l.b16 %v1908
        %v1998 = vunpack.c.h.b16 %v1908
        %v1999 = vunpack.c.l.b16 %v1909
        %v2000 = vunpack.c.h.b16 %v1909
        %v2001 = vunpack.c.l.b16 %v1910
        %v2002 = vunpack.c.h.b16 %v1910
        %v2003 = vunpack.c.l.b16 %v1911
        %v2004 = vunpack.c.h.b16 %v1911
        %v2005 = vunpack.c.l.b16 %v1912
        %v2006 = vunpack.c.h.b16 %v1912
        %v2007 = vunpack.c.l.b16 %v1913
        %v2008 = vunpack.c.h.b16 %v1913
        %v2009 = vunpack.c.l.b16 %v1914
        %v2010 = vunpack.c.h.b16 %v1914
        %v2011 = vpack.c.b16 %v1949, %v1947
        %v2012 = vpack.c.b16 %v1950, %v1948
        %v2013 = vpack.c.b16 %v1953, %v1951
        %v2014 = vpack.c.b16 %v1954, %v1952
        %v2015 = vpack.c.b16 %v1957, %v1955
        %v2016 = vpack.c.b16 %v1958, %v1956
        %v2017 = vpack.c.b16 %v1961, %v1959
        %v2018 = vpack.c.b16 %v1962, %v1960
        %v2019 = vpack.c.b16 %v1965, %v1963
        %v2020 = vpack.c.b16 %v1966, %v1964
        %v2021 = vpack.c.b16 %v1969, %v1967
        %v2022 = vpack.c.b16 %v1970, %v1968
        %v2023 = vpack.c.b16 %v1973, %v1971
        %v2024 = vpack.c.b16 %v1974, %v1972
        %v2025 = vpack.c.b16 %v1977, %v1975
        %v2026 = vpack.c.b16 %v1978, %v1976
        %v2027 = vpack.c.b16 %v1981, %v1979
        %v2028 = vpack.c.b16 %v1982, %v1980
        %v2029 = vpack.c.b16 %v1985, %v1983
        %v2030 = vpack.c.b16 %v1986, %v1984
        %v2031 = vpack.c.b16 %v1989, %v1987
        %v2032 = vpack.c.b16 %v1990, %v1988
        %v2033 = vpack.c.b16 %v1993, %v1991
        %v2034 = vpack.c.b16 %v1994, %v1992
        %v2035 = vpack.c.b16 %v1997, %v1995
        %v2036 = vpack.c.b16 %v1998, %v1996
        %v2037 = vpack.c.b16 %v2001, %v1999
        %v2038 = vpack.c.b16 %v2002, %v2000
        %v2039 = vpack.c.b16 %v2005, %v2003
        %v2040 = vpack.c.b16 %v2006, %v2004
        %v2041 = vpack.c.b16 %v2009, %v2007
        %v2042 = vpack.c.b16 %v2010, %v2008
        %2075 = vmatprep.subr.bf16.mxu0 %v2026
        %2076 = vmatpush1.bf16.msra.mxu0 %v2025
        %2077 = vmatprep.subr.bf16.mxu0 %v2024
        %2078 = vmatpush1.bf16.msra.mxu0 %v2023
        %2079 = vmatprep.subr.bf16.mxu0 %v2022
        %2080 = vmatpush1.bf16.msra.mxu0 %v2021
        %2081 = vmatprep.subr.bf16.mxu0 %v2020
        %2082 = vmatpush1.bf16.msra.mxu0 %v2019
        %2083 = vmatprep.subr.bf16.mxu0 %v2018
        %2084 = vmatpush1.bf16.msra.mxu0 %v2017
        %2085 = vmatprep.subr.bf16.mxu0 %v2016
        %2086 = vmatpush1.bf16.msra.mxu0 %v2015
        %2087 = vmatprep.subr.bf16.mxu0 %v2014
        %2088 = vmatpush1.bf16.msra.mxu0 %v2013
        %2089 = vmatprep.subr.bf16.mxu0 %v2012
        %2090 = vmatpush1.bf16.msra.mxu0 %v2011
        %2091 = vmatprep.subr.bf16.mxu0 %v2042
        %2092 = vmatpush2.bf16.msra.mxu0 %v2041
        %2093 = vmatprep.subr.bf16.mxu0 %v2040
        %2094 = vmatpush2.bf16.msra.mxu0 %v2039
        %2095 = vmatprep.subr.bf16.mxu0 %v2038
        %2096 = vmatpush2.bf16.msra.mxu0 %v2037
        %2097 = vmatprep.subr.bf16.mxu0 %v2036
        %2098 = vmatpush2.bf16.msra.mxu0 %v2035
        %2099 = vmatprep.subr.bf16.mxu0 %v2034
        %2100 = vmatpush2.bf16.msra.mxu0 %v2033
        %2101 = vmatprep.subr.bf16.mxu0 %v2032
        %2102 = vmatpush2.bf16.msra.mxu0 %v2031
        %2103 = vmatprep.subr.bf16.mxu0 %v2030
        %2104 = vmatpush2.bf16.msra.mxu0 %v2029
        %2105 = vmatprep.subr.bf16.mxu0 %v2028
        %2106 = vmatpush2.bf16.msra.mxu0 %v2027
        %2107 = vmatprep.mubr.bf16.mxu0 %v1852
        %2108 = vmatmul.mubr.bf16.gmra.mxu0 %v1851
        %v2109 = vpop.f32.mrf.mxu0
        %v2110 = vadd.f32 0.0, %v2109
        %v2111 = vpop.f32.mrf.mxu0
        %v2112 = vadd.f32 0.0, %v2111
        %v2113 = vpop.f32.mrf.mxu0
        %v2114 = vadd.f32 0.0, %v2113
        %v2115 = vpop.f32.mrf.mxu0
        %v2116 = vadd.f32 0.0, %v2115
        %2117 = vmatprep.mubr.bf16.mxu0 %v1854
        %2118 = vmatmul.mubr.bf16.gmra.mxu0 %v1853
        %v2119 = vpop.f32.mrf.mxu0
        %v2120 = vadd.f32 0.0, %v2119
        %v2121 = vpop.f32.mrf.mxu0
        %v2122 = vadd.f32 0.0, %v2121
        %v2123 = vpop.f32.mrf.mxu0
        %v2124 = vadd.f32 0.0, %v2123
        %v2125 = vpop.f32.mrf.mxu0
        %v2126 = vadd.f32 0.0, %v2125
        %2127 = vmatprep.mubr.bf16.mxu0 %v1856
        %2128 = vmatmul.mubr.bf16.gmra.mxu0 %v1855
        %v2129 = vpop.f32.mrf.mxu0
        %v2130 = vadd.f32 0.0, %v2129
        %v2131 = vpop.f32.mrf.mxu0
        %v2132 = vadd.f32 0.0, %v2131
        %v2133 = vpop.f32.mrf.mxu0
        %v2134 = vadd.f32 0.0, %v2133
        %v2135 = vpop.f32.mrf.mxu0
        %v2136 = vadd.f32 0.0, %v2135
        %2137 = vmatprep.mubr.bf16.mxu0 %v1858
        %2138 = vmatmul.mubr.bf16.gmra.mxu0 %v1857
        %v2139 = vpop.f32.mrf.mxu0
        %v2140 = vadd.f32 0.0, %v2139
        %v2141 = vpop.f32.mrf.mxu0
        %v2142 = vadd.f32 0.0, %v2141
        %v2143 = vpop.f32.mrf.mxu0
        %v2144 = vadd.f32 0.0, %v2143
        %v2145 = vpop.f32.mrf.mxu0
        %v2146 = vadd.f32 0.0, %v2145
        %2147 = vmatprep.mubr.bf16.mxu0 %v1860
        %2148 = vmatmul.mubr.bf16.gmra.mxu0 %v1859
        %v2149 = vpop.f32.mrf.mxu0
        %v2150 = vadd.f32 0.0, %v2149
        %v2151 = vpop.f32.mrf.mxu0
        %v2152 = vadd.f32 0.0, %v2151
        %v2153 = vpop.f32.mrf.mxu0
        %v2154 = vadd.f32 0.0, %v2153
        %v2155 = vpop.f32.mrf.mxu0
        %v2156 = vadd.f32 0.0, %v2155
        %2157 = vmatprep.mubr.bf16.mxu0 %v1862
        %2158 = vmatmul.mubr.bf16.gmra.mxu0 %v1861
        %v2159 = vpop.f32.mrf.mxu0
        %v2160 = vadd.f32 0.0, %v2159
        %v2161 = vpop.f32.mrf.mxu0
        %v2162 = vadd.f32 0.0, %v2161
        %v2163 = vpop.f32.mrf.mxu0
        %v2164 = vadd.f32 0.0, %v2163
        %v2165 = vpop.f32.mrf.mxu0
        %v2166 = vadd.f32 0.0, %v2165
        %2167 = vmatprep.mubr.bf16.mxu0 %v1864
        %2168 = vmatmul.mubr.bf16.gmra.mxu0 %v1863
        %v2169 = vpop.f32.mrf.mxu0
        %v2170 = vadd.f32 0.0, %v2169
        %v2171 = vpop.f32.mrf.mxu0
        %v2172 = vadd.f32 0.0, %v2171
        %v2173 = vpop.f32.mrf.mxu0
        %v2174 = vadd.f32 0.0, %v2173
        %v2175 = vpop.f32.mrf.mxu0
        %v2176 = vadd.f32 0.0, %v2175
        %2177 = vmatprep.mubr.bf16.mxu0 %v1866
        %2178 = vmatmul.mubr.bf16.gmra.mxu0 %v1865
        %v2179 = vpop.f32.mrf.mxu0
        %v2180 = vadd.f32 0.0, %v2179
        %v2181 = vpop.f32.mrf.mxu0
        %v2182 = vadd.f32 0.0, %v2181
        %v2183 = vpop.f32.mrf.mxu0
        %v2184 = vadd.f32 0.0, %v2183
        %v2185 = vpop.f32.mrf.mxu0
        %v2186 = vadd.f32 0.0, %v2185
        %2187 = vmatprep.mubr.bf16.mxu0 %v1868
        %2188 = vmatmul.mubr.bf16.gmra.mxu0 %v1867
        %v2189 = vpop.f32.mrf.mxu0
        %v2190 = vadd.f32 0.0, %v2189
        %v2191 = vpop.f32.mrf.mxu0
        %v2192 = vadd.f32 0.0, %v2191
        %v2193 = vpop.f32.mrf.mxu0
        %v2194 = vadd.f32 0.0, %v2193
        %v2195 = vpop.f32.mrf.mxu0
        %v2196 = vadd.f32 0.0, %v2195
        %2197 = vmatprep.mubr.bf16.mxu0 %v1870
        %2198 = vmatmul.mubr.bf16.gmra.mxu0 %v1869
        %v2199 = vpop.f32.mrf.mxu0
        %v2200 = vadd.f32 0.0, %v2199
        %v2201 = vpop.f32.mrf.mxu0
        %v2202 = vadd.f32 0.0, %v2201
        %v2203 = vpop.f32.mrf.mxu0
        %v2204 = vadd.f32 0.0, %v2203
        %v2205 = vpop.f32.mrf.mxu0
        %v2206 = vadd.f32 0.0, %v2205
        %2207 = vmatprep.mubr.bf16.mxu0 %v1872
        %2208 = vmatmul.mubr.bf16.gmra.mxu0 %v1871
        %v2209 = vpop.f32.mrf.mxu0
        %v2210 = vadd.f32 0.0, %v2209
        %v2211 = vpop.f32.mrf.mxu0
        %v2212 = vadd.f32 0.0, %v2211
        %v2213 = vpop.f32.mrf.mxu0
        %v2214 = vadd.f32 0.0, %v2213
        %v2215 = vpop.f32.mrf.mxu0
        %v2216 = vadd.f32 0.0, %v2215
        %2217 = vmatprep.mubr.bf16.mxu0 %v1874
        %2218 = vmatmul.mubr.bf16.gmra.mxu0 %v1873
        %v2219 = vpop.f32.mrf.mxu0
        %v2220 = vadd.f32 0.0, %v2219
        %v2221 = vpop.f32.mrf.mxu0
        %v2222 = vadd.f32 0.0, %v2221
        %v2223 = vpop.f32.mrf.mxu0
        %v2224 = vadd.f32 0.0, %v2223
        %v2225 = vpop.f32.mrf.mxu0
        %v2226 = vadd.f32 0.0, %v2225
        %2227 = vmatprep.mubr.bf16.mxu0 %v1876
        %2228 = vmatmul.mubr.bf16.gmra.mxu0 %v1875
        %v2229 = vpop.f32.mrf.mxu0
        %v2230 = vadd.f32 0.0, %v2229
        %v2231 = vpop.f32.mrf.mxu0
        %v2232 = vadd.f32 0.0, %v2231
        %v2233 = vpop.f32.mrf.mxu0
        %v2234 = vadd.f32 0.0, %v2233
        %v2235 = vpop.f32.mrf.mxu0
        %v2236 = vadd.f32 0.0, %v2235
        %2237 = vmatprep.mubr.bf16.mxu0 %v1878
        %2238 = vmatmul.mubr.bf16.gmra.mxu0 %v1877
        %v2239 = vpop.f32.mrf.mxu0
        %v2240 = vadd.f32 0.0, %v2239
        %v2241 = vpop.f32.mrf.mxu0
        %v2242 = vadd.f32 0.0, %v2241
        %v2243 = vpop.f32.mrf.mxu0
        %v2244 = vadd.f32 0.0, %v2243
        %v2245 = vpop.f32.mrf.mxu0
        %v2246 = vadd.f32 0.0, %v2245
        %2247 = vmatprep.mubr.bf16.mxu0 %v1880
        %2248 = vmatmul.mubr.bf16.gmra.mxu0 %v1879
        %v2249 = vpop.f32.mrf.mxu0
        %v2250 = vadd.f32 0.0, %v2249
        %v2251 = vpop.f32.mrf.mxu0
        %v2252 = vadd.f32 0.0, %v2251
        %v2253 = vpop.f32.mrf.mxu0
        %v2254 = vadd.f32 0.0, %v2253
        %v2255 = vpop.f32.mrf.mxu0
        %v2256 = vadd.f32 0.0, %v2255
        %2257 = vmatprep.mubr.bf16.mxu0 %v1882
        %2258 = vmatmul.mubr.bf16.gmra.mxu0 %v1881
        %v2259 = vpop.f32.mrf.mxu0
        %v2260 = vadd.f32 0.0, %v2259
        %v2261 = vpop.f32.mrf.mxu0
        %v2262 = vadd.f32 0.0, %v2261
        %v2263 = vpop.f32.mrf.mxu0
        %v2264 = vadd.f32 0.0, %v2263
        %v2265 = vpop.f32.mrf.mxu0
        %v2266 = vadd.f32 0.0, %v2265
        %2267 = vdwg.mxu0
        %v2268 = vadd.f32 %v1787, %v2110
        %v2269 = vadd.f32 %v1788, %v2112
        %v2270 = vadd.f32 %v1789, %v2114
        %v2271 = vadd.f32 %v1790, %v2116
        %v2272 = vadd.f32 %v1791, %v2120
        %v2273 = vadd.f32 %v1792, %v2122
        %v2274 = vadd.f32 %v1793, %v2124
        %v2275 = vadd.f32 %v1794, %v2126
        %v2276 = vadd.f32 %v1795, %v2130
        %v2277 = vadd.f32 %v1796, %v2132
        %v2278 = vadd.f32 %v1797, %v2134
        %v2279 = vadd.f32 %v1798, %v2136
        %v2280 = vadd.f32 %v1799, %v2140
        %v2281 = vadd.f32 %v1800, %v2142
        %v2282 = vadd.f32 %v1801, %v2144
        %v2283 = vadd.f32 %v1802, %v2146
        %v2284 = vadd.f32 %v1803, %v2150
        %v2285 = vadd.f32 %v1804, %v2152
        %v2286 = vadd.f32 %v1805, %v2154
        %v2287 = vadd.f32 %v1806, %v2156
        %v2288 = vadd.f32 %v1807, %v2160
        %v2289 = vadd.f32 %v1808, %v2162
        %v2290 = vadd.f32 %v1809, %v2164
        %v2291 = vadd.f32 %v1810, %v2166
        %v2292 = vadd.f32 %v1811, %v2170
        %v2293 = vadd.f32 %v1812, %v2172
        %v2294 = vadd.f32 %v1813, %v2174
        %v2295 = vadd.f32 %v1814, %v2176
        %v2296 = vadd.f32 %v1815, %v2180
        %v2297 = vadd.f32 %v1816, %v2182
        %v2298 = vadd.f32 %v1817, %v2184
        %v2299 = vadd.f32 %v1818, %v2186
        %v2300 = vadd.f32 %v1819, %v2190
        %v2301 = vadd.f32 %v1820, %v2192
        %v2302 = vadd.f32 %v1821, %v2194
        %v2303 = vadd.f32 %v1822, %v2196
        %v2304 = vadd.f32 %v1823, %v2200
        %v2305 = vadd.f32 %v1824, %v2202
        %v2306 = vadd.f32 %v1825, %v2204
        %v2307 = vadd.f32 %v1826, %v2206
        %v2308 = vadd.f32 %v1827, %v2210
        %v2309 = vadd.f32 %v1828, %v2212
        %v2310 = vadd.f32 %v1829, %v2214
        %v2311 = vadd.f32 %v1830, %v2216
        %v2312 = vadd.f32 %v1831, %v2220
        %v2313 = vadd.f32 %v1832, %v2222
        %v2314 = vadd.f32 %v1833, %v2224
        %v2315 = vadd.f32 %v1834, %v2226
        %v2316 = vadd.f32 %v1835, %v2230
        %v2317 = vadd.f32 %v1836, %v2232
        %v2318 = vadd.f32 %v1837, %v2234
        %v2319 = vadd.f32 %v1838, %v2236
        %v2320 = vadd.f32 %v1839, %v2240
        %v2321 = vadd.f32 %v1840, %v2242
        %v2322 = vadd.f32 %v1841, %v2244
        %v2323 = vadd.f32 %v1842, %v2246
        %v2324 = vadd.f32 %v1843, %v2250
        %v2325 = vadd.f32 %v1844, %v2252
        %v2326 = vadd.f32 %v1845, %v2254
        %v2327 = vadd.f32 %v1846, %v2256
        %v2328 = vadd.f32 %v1847, %v2260
        %v2329 = vadd.f32 %v1848, %v2262
        %v2330 = vadd.f32 %v1849, %v2264
        %v2331 = vadd.f32 %v1850, %v2266
        %2332 = vst [vmem:[#allocation2] sm:$0xff] %v2268
        %2333 = vst [vmem:[#allocation2 + $0x8] sm:$0xff] %v2269
        %2334 = vst [vmem:[#allocation2 + $0x10] sm:$0xff] %v2270
        %2335 = vst [vmem:[#allocation2 + $0x18] sm:$0xff] %v2271
        %2336 = vst [vmem:[#allocation2 + $0x20] sm:$0xff] %v2272
        %2337 = vst [vmem:[#allocation2 + $0x28] sm:$0xff] %v2273
        %2338 = vst [vmem:[#allocation2 + $0x30] sm:$0xff] %v2274
        %2339 = vst [vmem:[#allocation2 + $0x38] sm:$0xff] %v2275
        %2340 = vst [vmem:[#allocation2 + $0x40] sm:$0xff] %v2276
        %2341 = vst [vmem:[#allocation2 + $0x48] sm:$0xff] %v2277
        %2342 = vst [vmem:[#allocation2 + $0x50] sm:$0xff] %v2278
        %2343 = vst [vmem:[#allocation2 + $0x58] sm:$0xff] %v2279
        %2344 = vst [vmem:[#allocation2 + $0x60] sm:$0xff] %v2280
        %2345 = vst [vmem:[#allocation2 + $0x68] sm:$0xff] %v2281
        %2346 = vst [vmem:[#allocation2 + $0x70] sm:$0xff] %v2282
        %2347 = vst [vmem:[#allocation2 + $0x78] sm:$0xff] %v2283
        %2348 = vst [vmem:[#allocation2 + $0x80] sm:$0xff] %v2284
        %2349 = vst [vmem:[#allocation2 + $0x88] sm:$0xff] %v2285
        %2350 = vst [vmem:[#allocation2 + $0x90] sm:$0xff] %v2286
        %2351 = vst [vmem:[#allocation2 + $0x98] sm:$0xff] %v2287
        %2352 = vst [vmem:[#allocation2 + $0xa0] sm:$0xff] %v2288
        %2353 = vst [vmem:[#allocation2 + $0xa8] sm:$0xff] %v2289
        %2354 = vst [vmem:[#allocation2 + $0xb0] sm:$0xff] %v2290
        %2355 = vst [vmem:[#allocation2 + $0xb8] sm:$0xff] %v2291
        %2356 = vst [vmem:[#allocation2 + $0xc0] sm:$0xff] %v2292
        %2357 = vst [vmem:[#allocation2 + $0xc8] sm:$0xff] %v2293
        %2358 = vst [vmem:[#allocation2 + $0xd0] sm:$0xff] %v2294
        %2359 = vst [vmem:[#allocation2 + $0xd8] sm:$0xff] %v2295
        %2360 = vst [vmem:[#allocation2 + $0xe0] sm:$0xff] %v2296
        %2361 = vst [vmem:[#allocation2 + $0xe8] sm:$0xff] %v2297
        %2362 = vst [vmem:[#allocation2 + $0xf0] sm:$0xff] %v2298
        %2363 = vst [vmem:[#allocation2 + $0xf8] sm:$0xff] %v2299
        %2364 = vst [vmem:[#allocation2 + $0x100] sm:$0xff] %v2300
        %2365 = vst [vmem:[#allocation2 + $0x108] sm:$0xff] %v2301
        %2366 = vst [vmem:[#allocation2 + $0x110] sm:$0xff] %v2302
        %2367 = vst [vmem:[#allocation2 + $0x118] sm:$0xff] %v2303
        %2368 = vst [vmem:[#allocation2 + $0x120] sm:$0xff] %v2304
        %2369 = vst [vmem:[#allocation2 + $0x128] sm:$0xff] %v2305
        %2370 = vst [vmem:[#allocation2 + $0x130] sm:$0xff] %v2306
        %2371 = vst [vmem:[#allocation2 + $0x138] sm:$0xff] %v2307
        %2372 = vst [vmem:[#allocation2 + $0x140] sm:$0xff] %v2308
        %2373 = vst [vmem:[#allocation2 + $0x148] sm:$0xff] %v2309
        %2374 = vst [vmem:[#allocation2 + $0x150] sm:$0xff] %v2310
        %2375 = vst [vmem:[#allocation2 + $0x158] sm:$0xff] %v2311
        %2376 = vst [vmem:[#allocation2 + $0x160] sm:$0xff] %v2312
        %2377 = vst [vmem:[#allocation2 + $0x168] sm:$0xff] %v2313
        %2378 = vst [vmem:[#allocation2 + $0x170] sm:$0xff] %v2314
        %2379 = vst [vmem:[#allocation2 + $0x178] sm:$0xff] %v2315
        %2380 = vst [vmem:[#allocation2 + $0x180] sm:$0xff] %v2316
        %2381 = vst [vmem:[#allocation2 + $0x188] sm:$0xff] %v2317
        %2382 = vst [vmem:[#allocation2 + $0x190] sm:$0xff] %v2318
        %2383 = vst [vmem:[#allocation2 + $0x198] sm:$0xff] %v2319
        %2384 = vst [vmem:[#allocation2 + $0x1a0] sm:$0xff] %v2320
        %2385 = vst [vmem:[#allocation2 + $0x1a8] sm:$0xff] %v2321
        %2386 = vst [vmem:[#allocation2 + $0x1b0] sm:$0xff] %v2322
        %2387 = vst [vmem:[#allocation2 + $0x1b8] sm:$0xff] %v2323
        %2388 = vst [vmem:[#allocation2 + $0x1c0] sm:$0xff] %v2324
        %2389 = vst [vmem:[#allocation2 + $0x1c8] sm:$0xff] %v2325
        %2390 = vst [vmem:[#allocation2 + $0x1d0] sm:$0xff] %v2326
        %2391 = vst [vmem:[#allocation2 + $0x1d8] sm:$0xff] %v2327
        %2392 = vst [vmem:[#allocation2 + $0x1e0] sm:$0xff] %v2328
        %2393 = vst [vmem:[#allocation2 + $0x1e8] sm:$0xff] %v2329
        %2394 = vst [vmem:[#allocation2 + $0x1f0] sm:$0xff] %v2330
        %2395 = vst [vmem:[#allocation2 + $0x1f8] sm:$0xff] %v2331
        %p2396 = scmp.eq.s32.totalorder %s23, 1
        // Predicated region
        $region41: #{mlp_forward.1} parent=31 // pred_check
          %p2397 = pneg %p2396
        $region42: #{mlp_forward.1} parent=31 // pred_check_branch
          %2399 = sbr.rel (%p2397) target = $region44
        $region43: #{mlp_forward.1} parent=31 // pred_region
          %v2400 = vld [vmem:[#allocation2] sm:$0xff]
          %v2401 = vld [vmem:[#allocation2 + $0x8] sm:$0xff]
          %v2402 = vld [vmem:[#allocation2 + $0x10] sm:$0xff]
          %v2403 = vld [vmem:[#allocation2 + $0x18] sm:$0xff]
          %v2404 = vld [vmem:[#allocation2 + $0x20] sm:$0xff]
          %v2405 = vld [vmem:[#allocation2 + $0x28] sm:$0xff]
          %v2406 = vld [vmem:[#allocation2 + $0x30] sm:$0xff]
          %v2407 = vld [vmem:[#allocation2 + $0x38] sm:$0xff]
          %v2408 = vld [vmem:[#allocation2 + $0x40] sm:$0xff]
          %v2409 = vld [vmem:[#allocation2 + $0x48] sm:$0xff]
          %v2410 = vld [vmem:[#allocation2 + $0x50] sm:$0xff]
          %v2411 = vld [vmem:[#allocation2 + $0x58] sm:$0xff]
          %v2412 = vld [vmem:[#allocation2 + $0x60] sm:$0xff]
          %v2413 = vld [vmem:[#allocation2 + $0x68] sm:$0xff]
          %v2414 = vld [vmem:[#allocation2 + $0x70] sm:$0xff]
          %v2415 = vld [vmem:[#allocation2 + $0x78] sm:$0xff]
          %v2416 = vld [vmem:[#allocation2 + $0x80] sm:$0xff]
          %v2417 = vld [vmem:[#allocation2 + $0x88] sm:$0xff]
          %v2418 = vld [vmem:[#allocation2 + $0x90] sm:$0xff]
          %v2419 = vld [vmem:[#allocation2 + $0x98] sm:$0xff]
          %v2420 = vld [vmem:[#allocation2 + $0xa0] sm:$0xff]
          %v2421 = vld [vmem:[#allocation2 + $0xa8] sm:$0xff]
          %v2422 = vld [vmem:[#allocation2 + $0xb0] sm:$0xff]
          %v2423 = vld [vmem:[#allocation2 + $0xb8] sm:$0xff]
          %v2424 = vld [vmem:[#allocation2 + $0xc0] sm:$0xff]
          %v2425 = vld [vmem:[#allocation2 + $0xc8] sm:$0xff]
          %v2426 = vld [vmem:[#allocation2 + $0xd0] sm:$0xff]
          %v2427 = vld [vmem:[#allocation2 + $0xd8] sm:$0xff]
          %v2428 = vld [vmem:[#allocation2 + $0xe0] sm:$0xff]
          %v2429 = vld [vmem:[#allocation2 + $0xe8] sm:$0xff]
          %v2430 = vld [vmem:[#allocation2 + $0xf0] sm:$0xff]
          %v2431 = vld [vmem:[#allocation2 + $0xf8] sm:$0xff]
          %v2432 = vld [vmem:[#allocation2 + $0x100] sm:$0xff]
          %v2433 = vld [vmem:[#allocation2 + $0x108] sm:$0xff]
          %v2434 = vld [vmem:[#allocation2 + $0x110] sm:$0xff]
          %v2435 = vld [vmem:[#allocation2 + $0x118] sm:$0xff]
          %v2436 = vld [vmem:[#allocation2 + $0x120] sm:$0xff]
          %v2437 = vld [vmem:[#allocation2 + $0x128] sm:$0xff]
          %v2438 = vld [vmem:[#allocation2 + $0x130] sm:$0xff]
          %v2439 = vld [vmem:[#allocation2 + $0x138] sm:$0xff]
          %v2440 = vld [vmem:[#allocation2 + $0x140] sm:$0xff]
          %v2441 = vld [vmem:[#allocation2 + $0x148] sm:$0xff]
          %v2442 = vld [vmem:[#allocation2 + $0x150] sm:$0xff]
          %v2443 = vld [vmem:[#allocation2 + $0x158] sm:$0xff]
          %v2444 = vld [vmem:[#allocation2 + $0x160] sm:$0xff]
          %v2445 = vld [vmem:[#allocation2 + $0x168] sm:$0xff]
          %v2446 = vld [vmem:[#allocation2 + $0x170] sm:$0xff]
          %v2447 = vld [vmem:[#allocation2 + $0x178] sm:$0xff]
          %v2448 = vld [vmem:[#allocation2 + $0x180] sm:$0xff]
          %v2449 = vld [vmem:[#allocation2 + $0x188] sm:$0xff]
          %v2450 = vld [vmem:[#allocation2 + $0x190] sm:$0xff]
          %v2451 = vld [vmem:[#allocation2 + $0x198] sm:$0xff]
          %v2452 = vld [vmem:[#allocation2 + $0x1a0] sm:$0xff]
          %v2453 = vld [vmem:[#allocation2 + $0x1a8] sm:$0xff]
          %v2454 = vld [vmem:[#allocation2 + $0x1b0] sm:$0xff]
          %v2455 = vld [vmem:[#allocation2 + $0x1b8] sm:$0xff]
          %v2456 = vld [vmem:[#allocation2 + $0x1c0] sm:$0xff]
          %v2457 = vld [vmem:[#allocation2 + $0x1c8] sm:$0xff]
          %v2458 = vld [vmem:[#allocation2 + $0x1d0] sm:$0xff]
          %v2459 = vld [vmem:[#allocation2 + $0x1d8] sm:$0xff]
          %v2460 = vld [vmem:[#allocation2 + $0x1e0] sm:$0xff]
          %v2461 = vld [vmem:[#allocation2 + $0x1e8] sm:$0xff]
          %v2462 = vld [vmem:[#allocation2 + $0x1f0] sm:$0xff]
          %v2463 = vld [vmem:[#allocation2 + $0x1f8] sm:$0xff]
          %2464 = vst [vmem:[#allocation6] sm:$0xff] %v2400
          %2465 = vst [vmem:[#allocation6 + $0x8] sm:$0xff] %v2401
          %2466 = vst [vmem:[#allocation6 + $0x10] sm:$0xff] %v2402
          %2467 = vst [vmem:[#allocation6 + $0x18] sm:$0xff] %v2403
          %2468 = vst [vmem:[#allocation6 + $0x20] sm:$0xff] %v2404
          %2469 = vst [vmem:[#allocation6 + $0x28] sm:$0xff] %v2405
          %2470 = vst [vmem:[#allocation6 + $0x30] sm:$0xff] %v2406
          %2471 = vst [vmem:[#allocation6 + $0x38] sm:$0xff] %v2407
          %2472 = vst [vmem:[#allocation6 + $0x40] sm:$0xff] %v2408
          %2473 = vst [vmem:[#allocation6 + $0x48] sm:$0xff] %v2409
          %2474 = vst [vmem:[#allocation6 + $0x50] sm:$0xff] %v2410
          %2475 = vst [vmem:[#allocation6 + $0x58] sm:$0xff] %v2411
          %2476 = vst [vmem:[#allocation6 + $0x60] sm:$0xff] %v2412
          %2477 = vst [vmem:[#allocation6 + $0x68] sm:$0xff] %v2413
          %2478 = vst [vmem:[#allocation6 + $0x70] sm:$0xff] %v2414
          %2479 = vst [vmem:[#allocation6 + $0x78] sm:$0xff] %v2415
          %2480 = vst [vmem:[#allocation6 + $0x80] sm:$0xff] %v2416
          %2481 = vst [vmem:[#allocation6 + $0x88] sm:$0xff] %v2417
          %2482 = vst [vmem:[#allocation6 + $0x90] sm:$0xff] %v2418
          %2483 = vst [vmem:[#allocation6 + $0x98] sm:$0xff] %v2419
          %2484 = vst [vmem:[#allocation6 + $0xa0] sm:$0xff] %v2420
          %2485 = vst [vmem:[#allocation6 + $0xa8] sm:$0xff] %v2421
          %2486 = vst [vmem:[#allocation6 + $0xb0] sm:$0xff] %v2422
          %2487 = vst [vmem:[#allocation6 + $0xb8] sm:$0xff] %v2423
          %2488 = vst [vmem:[#allocation6 + $0xc0] sm:$0xff] %v2424
          %2489 = vst [vmem:[#allocation6 + $0xc8] sm:$0xff] %v2425
          %2490 = vst [vmem:[#allocation6 + $0xd0] sm:$0xff] %v2426
          %2491 = vst [vmem:[#allocation6 + $0xd8] sm:$0xff] %v2427
          %2492 = vst [vmem:[#allocation6 + $0xe0] sm:$0xff] %v2428
          %2493 = vst [vmem:[#allocation6 + $0xe8] sm:$0xff] %v2429
          %2494 = vst [vmem:[#allocation6 + $0xf0] sm:$0xff] %v2430
          %2495 = vst [vmem:[#allocation6 + $0xf8] sm:$0xff] %v2431
          %2496 = vst [vmem:[#allocation6 + $0x100] sm:$0xff] %v2432
          %2497 = vst [vmem:[#allocation6 + $0x108] sm:$0xff] %v2433
          %2498 = vst [vmem:[#allocation6 + $0x110] sm:$0xff] %v2434
          %2499 = vst [vmem:[#allocation6 + $0x118] sm:$0xff] %v2435
          %2500 = vst [vmem:[#allocation6 + $0x120] sm:$0xff] %v2436
          %2501 = vst [vmem:[#allocation6 + $0x128] sm:$0xff] %v2437
          %2502 = vst [vmem:[#allocation6 + $0x130] sm:$0xff] %v2438
          %2503 = vst [vmem:[#allocation6 + $0x138] sm:$0xff] %v2439
          %2504 = vst [vmem:[#allocation6 + $0x140] sm:$0xff] %v2440
          %2505 = vst [vmem:[#allocation6 + $0x148] sm:$0xff] %v2441
          %2506 = vst [vmem:[#allocation6 + $0x150] sm:$0xff] %v2442
          %2507 = vst [vmem:[#allocation6 + $0x158] sm:$0xff] %v2443
          %2508 = vst [vmem:[#allocation6 + $0x160] sm:$0xff] %v2444
          %2509 = vst [vmem:[#allocation6 + $0x168] sm:$0xff] %v2445
          %2510 = vst [vmem:[#allocation6 + $0x170] sm:$0xff] %v2446
          %2511 = vst [vmem:[#allocation6 + $0x178] sm:$0xff] %v2447
          %2512 = vst [vmem:[#allocation6 + $0x180] sm:$0xff] %v2448
          %2513 = vst [vmem:[#allocation6 + $0x188] sm:$0xff] %v2449
          %2514 = vst [vmem:[#allocation6 + $0x190] sm:$0xff] %v2450
          %2515 = vst [vmem:[#allocation6 + $0x198] sm:$0xff] %v2451
          %2516 = vst [vmem:[#allocation6 + $0x1a0] sm:$0xff] %v2452
          %2517 = vst [vmem:[#allocation6 + $0x1a8] sm:$0xff] %v2453
          %2518 = vst [vmem:[#allocation6 + $0x1b0] sm:$0xff] %v2454
          %2519 = vst [vmem:[#allocation6 + $0x1b8] sm:$0xff] %v2455
          %2520 = vst [vmem:[#allocation6 + $0x1c0] sm:$0xff] %v2456
          %2521 = vst [vmem:[#allocation6 + $0x1c8] sm:$0xff] %v2457
          %2522 = vst [vmem:[#allocation6 + $0x1d0] sm:$0xff] %v2458
          %2523 = vst [vmem:[#allocation6 + $0x1d8] sm:$0xff] %v2459
          %2524 = vst [vmem:[#allocation6 + $0x1e0] sm:$0xff] %v2460
          %2525 = vst [vmem:[#allocation6 + $0x1e8] sm:$0xff] %v2461
          %2526 = vst [vmem:[#allocation6 + $0x1f0] sm:$0xff] %v2462
          %2527 = vst [vmem:[#allocation6 + $0x1f8] sm:$0xff] %v2463
        $region44: #{mlp_forward.1} parent=31 // pred_fallthru
          _
        // Predicated region
        $region45: #{mlp_forward.1} parent=31 // pred_check
          %p2528 = pneg %p126
        $region46: #{mlp_forward.1} parent=31 // pred_check_branch
          %2530 = sbr.rel (%p2528) target = $region48
        $region47: #{mlp_forward.1} parent=31 // pred_region
          %s2531 = smul.u32 32, %s22
          %s2533 = ssub.s32 8192, 8192
          %2534 = vsyncadd [#allocation5], %s2533
          %s2535 = smul.addr %s2531, 2
          %s2536 = smul.addr %s2535, 128
          %s2537 = scalar_lea.hbm %s3, %s2536
          %s2538 = sshll.u32 [#allocation6], 4
          %s2539 = int_to_ptr.vmem [resolvable:$true] %s2538
          %2544 = dma.vmem_to_hbm [thread:$0]  %s2539, 8192, %s2537, [#allocation5], 256, 256, 16
        $region48: #{mlp_forward.1} parent=31 // pred_fallthru
          _
        // Predicated region
        $region49: #{mlp_forward.1} parent=31 // pred_check
          %p2545 = pneg %p126
        $region50: #{mlp_forward.1} parent=31 // pred_check_branch
          %2547 = sbr.rel (%p2545) target = $region52
        $region51: #{mlp_forward.1} parent=31 // pred_region
          %2548 = dma.done [#allocation5], 8192
        $region52: #{mlp_forward.1} parent=31 // pred_fallthru
          _
      $region32: #{mlp_forward.1} parent=5 // pred_fallthru
        _
      %p2549 = scmp.le.s32.totalorder 2, %s13
      // Predicated region
      $region53: #{mlp_forward.1} parent=5 // pred_check
        %p2550 = pneg %p2549
      $region54: #{mlp_forward.1} parent=5 // pred_check_branch
        %2552 = sbr.rel (%p2550) target = $region56
      $region55: #{mlp_forward.1} parent=5 // pred_region
        %s2553 = ssub.s32 %s13, 2
      $region56: #{mlp_forward.1} parent=5 // pred_fallthru
        _
    $region6: #{mlp_forward.1} parent=1 // loop_footer
      %s17 = sadd.s32 1, %s13
    $region7: #{mlp_forward.1} parent=1 // loop_footer_branch
      %12 = sbr.rel target = $region3
    $region8: #{mlp_forward.1} parent=1 // loop_exit
      _
    %2554 = vsyncpa [#allocation4], 1
    %s2555 = scalar_lea.sflag [#allocation4], 1
    %2556 = vsyncpa %s2555, 1
    %2557 = vsyncpa [#allocation5], 1
    %s2558 = scalar_lea.sflag [#allocation5], 1
    %2559 = vsyncpa %s2558, 1

</llo_original>
